<compile_context>
chip_gen: v5e
topology: v5e:2x2
jax: 0.10.0
libtpu: 0.0.40
codegen_flags: <defaults>
</compile_context>

<pallas_src>
import functools

import numpy as np

import jax
import jax.numpy as jnp
from jax.experimental import pallas as pl
from jax.experimental.pallas import tpu as pltpu

ALPHA = 0.75      # alpha used by both Focal losses inside total_loss
GAMMA = 2         # gamma == 2 -> plain squares
EPS = 1e-8
SMOOTH = 1.0      # DiceLoss smooth
IGNORE_INDEX = 0  # class 0 is ignored


# -----------------------------------------------------------------------------
# Pallas kernel: fused (optional softmax) + focal + dice accumulation.
# Grid = (B, num_lane_tiles); batch axis "parallel", lane axis "arbitrary".
# -----------------------------------------------------------------------------
def _focal_dice_kernel(pred_ref, tgt_ref, out_ref,
                       acc_f, acc_pt, acc_pp, acc_tt,
                       *, alpha, eps, m_total, lane_tile, softmax):
    j = pl.program_id(1)

    @pl.when(j == 0)
    def _init():
        acc_f[...] = jnp.zeros_like(acc_f)
        acc_pt[...] = jnp.zeros_like(acc_pt)
        acc_pp[...] = jnp.zeros_like(acc_pp)
        acc_tt[...] = jnp.zeros_like(acc_tt)

    p = pred_ref[...].astype(jnp.float32)        # [C, T]
    t = tgt_ref[...].astype(jnp.float32)         # [C, T]
    C, T = p.shape

    # Tail mask for the ragged last tile (lane positions >= M are padding).
    lane = jax.lax.broadcasted_iota(jnp.int32, (1, T), 1) + j * lane_tile
    in_bounds = lane < m_total                   # [1, T] bool

    # Neutralize padded lanes so logs / softmax stay finite; their contribution is
    # zeroed below because t -> 0 makes them "invalid" (argmax == ignore class 0).
    t = jnp.where(in_bounds, t, 0.0)
    if softmax:
        # Fused class-axis softmax (class axis fully resident in the block).
        z = jnp.where(in_bounds, p, 0.0)
        z = z - jnp.max(z, axis=0, keepdims=True)
        e = jnp.exp(z)
        p = e / jnp.sum(e, axis=0, keepdims=True)
    else:
        p = jnp.where(in_bounds, p, 0.5)

    # valid-pixel mask: argmax_c(target) != 0 with first-occurrence tie-breaking
    #   <=>  max(t[1:, :]) > t[0, :].
    if C > 1:
        valid = (jnp.max(t[1:, :], axis=0, keepdims=True)
                 > t[0:1, :]).astype(jnp.float32)            # [1, T]
    else:
        valid = jnp.zeros((1, T), jnp.float32)

    # Focal terms (gamma == 2 -> plain squares).
    one_m_p = 1.0 - p
    term_true = (-alpha) * (one_m_p * one_m_p) * jnp.log(p + eps)
    term_false = (alpha - 1.0) * (p * p) * jnp.log(one_m_p + eps)
    focal = term_true * t + term_false * (1.0 - t)           # [C, T]

    # Pure elementwise accumulation; all cross-lane reductions deferred to the end.
    acc_f[...] += focal * valid
    acc_pt[...] += (p * t) * valid
    acc_pp[...] += (p * p) * valid
    acc_tt[...] += (t * t) * valid

    @pl.when(j == pl.num_programs(1) - 1)
    def _finalize():
        row = jax.lax.broadcasted_iota(jnp.int32, (8, 128), 0)
        tile = jnp.where(row == 0, jnp.sum(acc_f[...]), 0.0)
        tile = jnp.where(row == 1, jnp.sum(acc_pt[...]), tile)
        tile = jnp.where(row == 2, jnp.sum(acc_pp[...]), tile)
        tile = jnp.where(row == 3, jnp.sum(acc_tt[...]), tile)
        out_ref[...] = tile                                   # one unmasked store / image


def _pick_lane_tile(m, c, pred_itemsize, tgt_itemsize):
    """Lane tile: multiple of 128, ~2 MiB of streamed input bytes per grid step,
    capped at 16K lanes so buffers + accumulators stay small vs v7x's 64 MiB VMEM."""
    m_pad = pl.cdiv(m, 128) * 128
    per_lane = max(c * (pred_itemsize + tgt_itemsize), 1)
    t = (2 * 1024 * 1024) // per_lane
    t = max(128, min(t, 16 * 1024, m_pad))
    return (t // 128) * 128


def _focal_dice_partials(pred_bcm, tgt_bcm, *, softmax=False, alpha=ALPHA, eps=EPS):
    """Per-image [focal_sum, sum p*t, sum p^2, sum t^2] over valid (non-ignore) pixels."""
    B, C, M = pred_bcm.shape
    pred_isz = jnp.dtype(pred_bcm.dtype).itemsize
    tgt_isz = jnp.dtype(tgt_bcm.dtype).itemsize
    T = _pick_lane_tile(M, C, pred_isz, tgt_isz)
    nt = pl.cdiv(M, T)

    # VMEM budget: double-buffered inputs + 4 f32 accumulators + temporaries.
    c_pad = ((C + 7) // 8) * 8
    est = (2 * c_pad * T * (pred_isz + tgt_isz)      # 2 pipeline buffers per input
           + 4 * c_pad * T * 4                       # accumulators
           + 8 * c_pad * T * 4)                      # elementwise temporaries (estimate)
    vmem_limit = int(min(max(int(est * 1.5) + (2 << 20), 8 << 20), 64 << 20))

    in_spec = pl.BlockSpec((None, C, T), lambda b, j: (b, 0, j))
    out_spec = pl.BlockSpec((None, 8, 128), lambda b, j: (b, 0, 0))

    out = pl.pallas_call(
        functools.partial(_focal_dice_kernel, alpha=alpha, eps=eps,
                          m_total=M, lane_tile=T, softmax=softmax),
        out_shape=jax.ShapeDtypeStruct((B, 8, 128), jnp.float32),
        grid=(B, nt),
        in_specs=[in_spec, in_spec],
        out_specs=out_spec,
        scratch_shapes=[pltpu.VMEM((C, T), jnp.float32)] * 4,
        compiler_params=pltpu.CompilerParams(
            dimension_semantics=("parallel", "arbitrary"),
            vmem_limit_bytes=vmem_limit),
    )(pred_bcm, tgt_bcm)

    return out[:, 0, 0], out[:, 1, 0], out[:, 2, 0], out[:, 3, 0]


# -----------------------------------------------------------------------------
# Lovasz-Softmax (classes='present', per_image=True, ignore=0) — plain JAX.
# TODO(synk): data-dependent descending sort + cumsum over dynamically filtered valid
# points has no clean Pallas equivalent; known hotspot for large N (extra HBM pass).
# -----------------------------------------------------------------------------
def _lovasz_per_image(probs_cn, labels_cn, *, ignore_index=IGNORE_INDEX):
    C, N = probs_cn.shape
    lab = jnp.argmax(labels_cn, axis=0)                               # [N]
    valid = lab != ignore_index                                       # [N]
    fg = ((lab[None, :] == jnp.arange(C)[:, None]) & valid[None, :]
          ).astype(jnp.float32)                                       # [C, N]
    # Invalid points get error 0: they sort to the back and contribute nothing.
    errors = jnp.where(valid[None, :], jnp.abs(fg - probs_cn), 0.0)   # [C, N]
    order = jnp.argsort(-errors, axis=1)                              # descending
    e_s = jnp.take_along_axis(errors, order, axis=1)
    fg_s = jnp.take_along_axis(fg, order, axis=1)
    gts = jnp.sum(fg_s, axis=1, keepdims=True)                        # [C, 1]
    inter = gts - jnp.cumsum(fg_s, axis=1)
    union = gts + jnp.cumsum(1.0 - fg_s, axis=1)
    jac = 1.0 - inter / union
    grad = jnp.concatenate([jac[:, :1], jac[:, 1:] - jac[:, :-1]], axis=1)
    loss_c = jnp.sum(e_s * grad, axis=1)                              # [C]
    present = gts[:, 0] > 0        # class 0 is never "present" (valid => lab != 0)
    n_present = jnp.sum(present.astype(jnp.float32))
    return jnp.sum(jnp.where(present, loss_c, 0.0)) / jnp.maximum(n_present, 1.0)


# -----------------------------------------------------------------------------
# total_loss forward
# -----------------------------------------------------------------------------
def total_loss_forward(segment_out, segment_label, uv_out, uv_label):
    B, C, H, W = segment_out.shape
    seg_p = segment_out.reshape(B, C, H * W)
    seg_t = segment_label.reshape(B, C, H * W)     # one-hot labels; bf16 input supported

    # ---- 2D branch: FocalLoss(sum) + DiceLoss(sum), ignoring class-0 pixels ----
    f2d, s_pt, s_pp, s_tt = _focal_dice_partials(seg_p, seg_t)
    focal_2d = jnp.sum(f2d)
    dice_2d = jnp.sum(1.0 - 2.0 * (s_pt + SMOOTH) / (s_pp + s_tt + SMOOTH))

    # ---- 3D branch: in-kernel softmax over classes, Focal_3D(sum) + Lovasz(mean) ----
    f3d, _, _, _ = _focal_dice_partials(uv_out, uv_label, softmax=True)
    focal_3d = jnp.sum(f3d)
    uv_prob = jax.nn.softmax(uv_out.astype(jnp.float32), axis=1)   # Lovasz needs probs
    lovasz_3d = jnp.mean(jax.vmap(_lovasz_per_image)(
        uv_prob, uv_label.astype(jnp.float32)))

    return focal_2d + dice_2d + focal_3d + lovasz_3d


total_loss = jax.jit(total_loss_forward)


# -----------------------------------------------------------------------------
# Pure numpy (float64) reference — literal transcription of the PyTorch code.
# -----------------------------------------------------------------------------
def _np_softmax(x, axis):
    x = x - x.max(axis=axis, keepdims=True)
    e = np.exp(x)
    return e / e.sum(axis=axis, keepdims=True)


def _ref_focal_sum(pred_bcm, tgt_bcm):
    total = 0.0
    for b in range(pred_bcm.shape[0]):
        probas = pred_bcm[b].T          # [M, C]
        labels = tgt_bcm[b].T           # [M, C]
        valid = np.argmax(tgt_bcm[b], axis=0) != IGNORE_INDEX
        vp, vt = probas[valid], labels[valid]
        term_true = -ALPHA * (1.0 - vp) ** GAMMA * np.log(vp + EPS)
        term_false = -(1.0 - ALPHA) * vp ** GAMMA * np.log(1.0 - vp + EPS)
        total += np.sum(term_true * vt + term_false * (1.0 - vt))
    return total


def _ref_dice_sum(pred_bcm, tgt_bcm):
    total = 0.0
    for b in range(pred_bcm.shape[0]):
        valid = np.argmax(tgt_bcm[b], axis=0) != IGNORE_INDEX
        vp = pred_bcm[b].T[valid].reshape(-1)
        vt = tgt_bcm[b].T[valid].reshape(-1)
        num = 2.0 * (np.sum(vp * vt) + SMOOTH)
        den = np.sum(vp ** 2) + np.sum(vt ** 2) + SMOOTH
        total += 1.0 - num / den
    return total


def _ref_lovasz_mean(probs_bcn, labels_bcn):
    B, C, _ = probs_bcn.shape
    per_image = []
    for b in range(B):
        lab = np.argmax(labels_bcn[b], axis=0)
        valid = lab != IGNORE_INDEX
        vp = probs_bcn[b].T[valid]      # [P, C]
        vl = lab[valid]                 # [P]
        losses = []
        for c in range(C):
            fg = (vl == c).astype(np.float64)
            if fg.sum() == 0:
                continue
            errors = np.abs(fg - vp[:, c])
            order = np.argsort(-errors, kind="stable")
            e_s, fg_s = errors[order], fg[order]
            gts = fg_s.sum()
            inter = gts - np.cumsum(fg_s)
            union = gts + np.cumsum(1.0 - fg_s)
            jac = 1.0 - inter / union
            if len(fg_s) > 1:
                jac[1:] = jac[1:] - jac[:-1]
            losses.append(np.dot(e_s, jac))
        per_image.append(np.mean(losses) if losses else 0.0)
    return float(np.mean(per_image))


def _reference_total_loss(segment_out, segment_label, uv_out, uv_label):
    B, C, H, W = segment_out.shape
    seg_p = segment_out.reshape(B, C, H * W).astype(np.float64)
    seg_t = segment_label.reshape(B, C, H * W).astype(np.float64)
    f2d = _ref_focal_sum(seg_p, seg_t)
    d2d = _ref_dice_sum(seg_p, seg_t)
    uv_prob = _np_softmax(uv_out.astype(np.float64), axis=1)
    uv_t = uv_label.astype(np.float64)
    f3d = _ref_focal_sum(uv_prob, uv_t)
    lov = _ref_lovasz_mean(uv_prob, uv_t)
    return f2d + d2d + f3d + lov


if __name__ == "__main__":
    B, C, H, W, N = 2, 5, 16, 16, 256
    key = jax.random.PRNGKey(0)
    k1, k2, k3, k4 = jax.random.split(key, 4)

    # 2D branch: probabilities + one-hot labels (labels streamed as bf16: exact 0/1,
    # half the HBM label traffic for the kernel).
    segment_out = jax.nn.softmax(
        jax.random.normal(k1, (B, C, H, W), jnp.float32), axis=1)
    segment_label = jax.nn.one_hot(
        jax.random.randint(k2, (B, H, W), 0, C), C, axis=1, dtype=jnp.bfloat16)

    # 3D branch: raw logits (the module softmaxes over dim=1) + one-hot bf16 labels.
    uv_out = jax.random.normal(k3, (B, C, N), jnp.float32)
    uv_label = jax.nn.one_hot(
        jax.random.randint(k4, (B, N), 0, C), C, axis=1, dtype=jnp.bfloat16)

    loss = total_loss(segment_out, segment_label, uv_out, uv_label)
    jax.block_until_ready(loss)

    ref = _reference_total_loss(
        np.asarray(segment_out),
        np.asarray(segment_label.astype(jnp.float32)),
        np.asarray(uv_out),
        np.asarray(uv_label.astype(jnp.float32)))
    assert abs(float(loss) - ref) <= 1e-3 + 1e-3 * abs(ref), (float(loss), ref)
    print("KERNEL_OK")
</pallas_src>

<mosaic_0001>
module attributes {stable_mosaic.version = 11 : i64} {
  func.func @_focal_dice_kernel(%arg0: i32, %arg1: i32, %arg2: memref<1x5x256xf32, #tpu.memory_space<vmem>>, %arg3: memref<1x5x256xbf16, #tpu.memory_space<vmem>>, %arg4: memref<1x8x128xf32, #tpu.memory_space<vmem>>, %arg5: memref<5x256xf32, #tpu.memory_space<vmem>>, %arg6: memref<5x256xf32, #tpu.memory_space<vmem>>, %arg7: memref<5x256xf32, #tpu.memory_space<vmem>>, %arg8: memref<5x256xf32, #tpu.memory_space<vmem>>) attributes {dimension_semantics = [#tpu.dimension_semantics<parallel>, #tpu.dimension_semantics<arbitrary>], iteration_bounds = array<i64: 2, 1>, scalar_prefetch = 0 : i64, scratch_operands = 4 : i64, tpu.core_type = #tpu.core_type<tc>, window_params = [{transform_indices = @transform_0, window_bounds = array<i64: 1, 5, 256>}, {transform_indices = @transform_1, window_bounds = array<i64: 1, 5, 256>}, {transform_indices = @transform_2, window_bounds = array<i64: 1, 8, 128>}]} {
    %c0_i32 = arith.constant 0 : i32
    %0 = arith.cmpi eq, %arg1, %c0_i32 : i32
    %1 = arith.extui %0 : i1 to i32
    %c0_i32_0 = arith.constant 0 : i32
    %2 = arith.cmpi ne, %1, %c0_i32_0 : i32
    scf.if %2 {
      %cst_33 = arith.constant 0.000000e+00 : f32
      %76 = vector.broadcast %cst_33 : f32 to vector<5x256xf32>
      %c0_34 = arith.constant 0 : index
      %c0_35 = arith.constant 0 : index
      %77 = vector.load %arg5[%c0_34, %c0_35] : memref<5x256xf32, #tpu.memory_space<vmem>>, vector<5x256xf32>
      tpu.vector_store %arg5[%c0_34, %c0_35], %76 {strides = array<i32>} : memref<5x256xf32, #tpu.memory_space<vmem>>, vector<5x256xf32>,
      %cst_36 = arith.constant 0.000000e+00 : f32
      %78 = vector.broadcast %cst_36 : f32 to vector<5x256xf32>
      %c0_37 = arith.constant 0 : index
      %c0_38 = arith.constant 0 : index
      %79 = vector.load %arg6[%c0_37, %c0_38] : memref<5x256xf32, #tpu.memory_space<vmem>>, vector<5x256xf32>
      tpu.vector_store %arg6[%c0_37, %c0_38], %78 {strides = array<i32>} : memref<5x256xf32, #tpu.memory_space<vmem>>, vector<5x256xf32>,
      %cst_39 = arith.constant 0.000000e+00 : f32
      %80 = vector.broadcast %cst_39 : f32 to vector<5x256xf32>
      %c0_40 = arith.constant 0 : index
      %c0_41 = arith.constant 0 : index
      %81 = vector.load %arg7[%c0_40, %c0_41] : memref<5x256xf32, #tpu.memory_space<vmem>>, vector<5x256xf32>
      tpu.vector_store %arg7[%c0_40, %c0_41], %80 {strides = array<i32>} : memref<5x256xf32, #tpu.memory_space<vmem>>, vector<5x256xf32>,
      %cst_42 = arith.constant 0.000000e+00 : f32
      %82 = vector.broadcast %cst_42 : f32 to vector<5x256xf32>
      %c0_43 = arith.constant 0 : index
      %c0_44 = arith.constant 0 : index
      %83 = vector.load %arg8[%c0_43, %c0_44] : memref<5x256xf32, #tpu.memory_space<vmem>>, vector<5x256xf32>
      tpu.vector_store %arg8[%c0_43, %c0_44], %82 {strides = array<i32>} : memref<5x256xf32, #tpu.memory_space<vmem>>, vector<5x256xf32>,
    } else {
    }
    %c0 = arith.constant 0 : index
    %c0_1 = arith.constant 0 : index
    %c0_2 = arith.constant 0 : index
    %3 = vector.load %arg2[%c0, %c0_1, %c0_2] : memref<1x5x256xf32, #tpu.memory_space<vmem>>, vector<1x5x256xf32>
    %4 = vector.shape_cast %3 : vector<1x5x256xf32> to vector<5x256xf32>
    %c0_3 = arith.constant 0 : index
    %c0_4 = arith.constant 0 : index
    %c0_5 = arith.constant 0 : index
    %5 = vector.load %arg3[%c0_3, %c0_4, %c0_5] : memref<1x5x256xbf16, #tpu.memory_space<vmem>>, vector<1x5x256xbf16>
    %6 = vector.shape_cast %5 : vector<1x5x256xbf16> to vector<5x256xbf16>
    %7 = arith.extf %6 : vector<5x256xbf16> to vector<5x256xf32>
    %8 = tpu.iota {dimensions = array<i32: 1>} : vector<1x256xi32>
    %c256_i32 = arith.constant 256 : i32
    %9 = arith.muli %arg1, %c256_i32 : i32
    %10 = vector.broadcast %9 : i32 to vector<1x256xi32>
    %11 = arith.addi %8, %10 : vector<1x256xi32>
    %c256_i32_6 = arith.constant 256 : i32
    %12 = vector.broadcast %c256_i32_6 : i32 to vector<1x256xi32>
    %13 = arith.cmpi slt, %11, %12 : vector<1x256xi32>
    %cst = arith.constant 0.000000e+00 : f32
    %14 = vector.shape_cast %13 : vector<1x256xi1> to vector<1x256xi1>
    %15 = vector.broadcast %14 : vector<1x256xi1> to vector<5x256xi1>
    %16 = vector.broadcast %cst : f32 to vector<5x256xf32>
    %17 = arith.select %15, %7, %16 : vector<5x256xi1>, vector<5x256xf32>
    %cst_7 = arith.constant 5.000000e-01 : f32
    %18 = vector.shape_cast %13 : vector<1x256xi1> to vector<1x256xi1>
    %19 = vector.broadcast %18 : vector<1x256xi1> to vector<5x256xi1>
    %20 = vector.broadcast %cst_7 : f32 to vector<5x256xf32>
    %21 = arith.select %19, %4, %20 : vector<5x256xi1>, vector<5x256xf32>
    %22 = vector.extract_strided_slice %17 {offsets = [1, 0], sizes = [4, 256], strides = [1, 1]} : vector<5x256xf32> to vector<4x256xf32>
    %cst_8 = arith.constant dense<0xFF800000> : vector<256xf32>
    %23 = vector.multi_reduction <maximumf>, %22, %cst_8 [0] : vector<4x256xf32> to vector<256xf32>
    %24 = vector.shape_cast %23 : vector<256xf32> to vector<1x256xf32>
    %25 = vector.extract_strided_slice %17 {offsets = [0, 0], sizes = [1, 256], strides = [1, 1]} : vector<5x256xf32> to vector<1x256xf32>
    %26 = arith.cmpf ogt, %24, %25 : vector<1x256xf32>
    %27 = arith.extui %26 : vector<1x256xi1> to vector<1x256xi32>
    %28 = arith.sitofp %27 : vector<1x256xi32> to vector<1x256xf32>
    %cst_9 = arith.constant 1.000000e+00 : f32
    %29 = vector.broadcast %cst_9 : f32 to vector<5x256xf32>
    %30 = arith.subf %29, %21 : vector<5x256xf32>
    %31 = arith.mulf %30, %30 : vector<5x256xf32>
    %cst_10 = arith.constant -7.500000e-01 : f32
    %32 = vector.broadcast %cst_10 : f32 to vector<5x256xf32>
    %33 = arith.mulf %32, %31 : vector<5x256xf32>
    %cst_11 = arith.constant 9.99999993E-9 : f32
    %34 = vector.broadcast %cst_11 : f32 to vector<5x256xf32>
    %35 = arith.addf %21, %34 : vector<5x256xf32>
    %36 = math.log %35 : vector<5x256xf32>
    %37 = arith.mulf %33, %36 : vector<5x256xf32>
    %38 = arith.mulf %21, %21 : vector<5x256xf32>
    %cst_12 = arith.constant -2.500000e-01 : f32
    %39 = vector.broadcast %cst_12 : f32 to vector<5x256xf32>
    %40 = arith.mulf %39, %38 : vector<5x256xf32>
    %cst_13 = arith.constant 9.99999993E-9 : f32
    %41 = vector.broadcast %cst_13 : f32 to vector<5x256xf32>
    %42 = arith.addf %30, %41 : vector<5x256xf32>
    %43 = math.log %42 : vector<5x256xf32>
    %44 = arith.mulf %40, %43 : vector<5x256xf32>
    %45 = arith.mulf %37, %17 : vector<5x256xf32>
    %cst_14 = arith.constant 1.000000e+00 : f32
    %46 = vector.broadcast %cst_14 : f32 to vector<5x256xf32>
    %47 = arith.subf %46, %17 : vector<5x256xf32>
    %48 = arith.mulf %44, %47 : vector<5x256xf32>
    %49 = arith.addf %45, %48 : vector<5x256xf32>
    %c0_15 = arith.constant 0 : index
    %c0_16 = arith.constant 0 : index
    %50 = vector.load %arg5[%c0_15, %c0_16] : memref<5x256xf32, #tpu.memory_space<vmem>>, vector<5x256xf32>
    %51 = vector.broadcast %28 : vector<1x256xf32> to vector<5x256xf32>
    %52 = arith.mulf %49, %51 : vector<5x256xf32>
    %53 = arith.addf %50, %52 : vector<5x256xf32>
    %c0_17 = arith.constant 0 : index
    %c0_18 = arith.constant 0 : index
    %54 = vector.load %arg5[%c0_17, %c0_18] : memref<5x256xf32, #tpu.memory_space<vmem>>, vector<5x256xf32>
    tpu.vector_store %arg5[%c0_17, %c0_18], %53 {strides = array<i32>} : memref<5x256xf32, #tpu.memory_space<vmem>>, vector<5x256xf32>,
    %c0_19 = arith.constant 0 : index
    %c0_20 = arith.constant 0 : index
    %55 = vector.load %arg6[%c0_19, %c0_20] : memref<5x256xf32, #tpu.memory_space<vmem>>, vector<5x256xf32>
    %56 = arith.mulf %21, %17 : vector<5x256xf32>
    %57 = vector.broadcast %28 : vector<1x256xf32> to vector<5x256xf32>
    %58 = arith.mulf %56, %57 : vector<5x256xf32>
    %59 = arith.addf %55, %58 : vector<5x256xf32>
    %c0_21 = arith.constant 0 : index
    %c0_22 = arith.constant 0 : index
    %60 = vector.load %arg6[%c0_21, %c0_22] : memref<5x256xf32, #tpu.memory_space<vmem>>, vector<5x256xf32>
    tpu.vector_store %arg6[%c0_21, %c0_22], %59 {strides = array<i32>} : memref<5x256xf32, #tpu.memory_space<vmem>>, vector<5x256xf32>,
    %c0_23 = arith.constant 0 : index
    %c0_24 = arith.constant 0 : index
    %61 = vector.load %arg7[%c0_23, %c0_24] : memref<5x256xf32, #tpu.memory_space<vmem>>, vector<5x256xf32>
    %62 = arith.mulf %21, %21 : vector<5x256xf32>
    %63 = vector.broadcast %28 : vector<1x256xf32> to vector<5x256xf32>
    %64 = arith.mulf %62, %63 : vector<5x256xf32>
    %65 = arith.addf %61, %64 : vector<5x256xf32>
    %c0_25 = arith.constant 0 : index
    %c0_26 = arith.constant 0 : index
    %66 = vector.load %arg7[%c0_25, %c0_26] : memref<5x256xf32, #tpu.memory_space<vmem>>, vector<5x256xf32>
    tpu.vector_store %arg7[%c0_25, %c0_26], %65 {strides = array<i32>} : memref<5x256xf32, #tpu.memory_space<vmem>>, vector<5x256xf32>,
    %c0_27 = arith.constant 0 : index
    %c0_28 = arith.constant 0 : index
    %67 = vector.load %arg8[%c0_27, %c0_28] : memref<5x256xf32, #tpu.memory_space<vmem>>, vector<5x256xf32>
    %68 = arith.mulf %17, %17 : vector<5x256xf32>
    %69 = vector.broadcast %28 : vector<1x256xf32> to vector<5x256xf32>
    %70 = arith.mulf %68, %69 : vector<5x256xf32>
    %71 = arith.addf %67, %70 : vector<5x256xf32>
    %c0_29 = arith.constant 0 : index
    %c0_30 = arith.constant 0 : index
    %72 = vector.load %arg8[%c0_29, %c0_30] : memref<5x256xf32, #tpu.memory_space<vmem>>, vector<5x256xf32>
    tpu.vector_store %arg8[%c0_29, %c0_30], %71 {strides = array<i32>} : memref<5x256xf32, #tpu.memory_space<vmem>>, vector<5x256xf32>,
    %c0_i32_31 = arith.constant 0 : i32
    %73 = arith.cmpi eq, %arg1, %c0_i32_31 : i32
    %74 = arith.extui %73 : i1 to i32
    %c0_i32_32 = arith.constant 0 : i32
    %75 = arith.cmpi ne, %74, %c0_i32_32 : i32
    scf.if %75 {
      %76 = tpu.iota {dimensions = array<i32: 0>} : vector<8x128xi32>
      %c0_i32_33 = arith.constant 0 : i32
      %77 = vector.broadcast %c0_i32_33 : i32 to vector<8x128xi32>
      %78 = arith.cmpi eq, %76, %77 : vector<8x128xi32>
      %c0_34 = arith.constant 0 : index
      %c0_35 = arith.constant 0 : index
      %79 = vector.load %arg5[%c0_34, %c0_35] : memref<5x256xf32, #tpu.memory_space<vmem>>, vector<5x256xf32>
      %80 = vector.shape_cast %79 : vector<5x256xf32> to vector<1x5x256xf32>
      %cst_36 = arith.constant dense<0.000000e+00> : vector<1xf32>
      %81 = vector.multi_reduction <add>, %80, %cst_36 [1, 2] : vector<1x5x256xf32> to vector<1xf32>
      %82 = vector.shape_cast %81 : vector<1xf32> to vector<1x1x1xf32>
      %83 = vector.extract %82[0, 0, 0] : f32 from vector<1x1x1xf32>
      %cst_37 = arith.constant 0.000000e+00 : f32
      %84 = vector.broadcast %83 : f32 to vector<8x128xf32>
      %85 = vector.broadcast %cst_37 : f32 to vector<8x128xf32>
      %86 = arith.select %78, %84, %85 : vector<8x128xi1>, vector<8x128xf32>
      %c1_i32 = arith.constant 1 : i32
      %87 = vector.broadcast %c1_i32 : i32 to vector<8x128xi32>
      %88 = arith.cmpi eq, %76, %87 : vector<8x128xi32>
      %c0_38 = arith.constant 0 : index
      %c0_39 = arith.constant 0 : index
      %89 = vector.load %arg6[%c0_38, %c0_39] : memref<5x256xf32, #tpu.memory_space<vmem>>, vector<5x256xf32>
      %90 = vector.shape_cast %89 : vector<5x256xf32> to vector<1x5x256xf32>
      %cst_40 = arith.constant dense<0.000000e+00> : vector<1xf32>
      %91 = vector.multi_reduction <add>, %90, %cst_40 [1, 2] : vector<1x5x256xf32> to vector<1xf32>
      %92 = vector.shape_cast %91 : vector<1xf32> to vector<1x1x1xf32>
      %93 = vector.extract %92[0, 0, 0] : f32 from vector<1x1x1xf32>
      %94 = vector.broadcast %93 : f32 to vector<8x128xf32>
      %95 = arith.select %88, %94, %86 : vector<8x128xi1>, vector<8x128xf32>
      %c2_i32 = arith.constant 2 : i32
      %96 = vector.broadcast %c2_i32 : i32 to vector<8x128xi32>
      %97 = arith.cmpi eq, %76, %96 : vector<8x128xi32>
      %c0_41 = arith.constant 0 : index
      %c0_42 = arith.constant 0 : index
      %98 = vector.load %arg7[%c0_41, %c0_42] : memref<5x256xf32, #tpu.memory_space<vmem>>, vector<5x256xf32>
      %99 = vector.shape_cast %98 : vector<5x256xf32> to vector<1x5x256xf32>
      %cst_43 = arith.constant dense<0.000000e+00> : vector<1xf32>
      %100 = vector.multi_reduction <add>, %99, %cst_43 [1, 2] : vector<1x5x256xf32> to vector<1xf32>
      %101 = vector.shape_cast %100 : vector<1xf32> to vector<1x1x1xf32>
      %102 = vector.extract %101[0, 0, 0] : f32 from vector<1x1x1xf32>
      %103 = vector.broadcast %102 : f32 to vector<8x128xf32>
      %104 = arith.select %97, %103, %95 : vector<8x128xi1>, vector<8x128xf32>
      %c3_i32 = arith.constant 3 : i32
      %105 = vector.broadcast %c3_i32 : i32 to vector<8x128xi32>
      %106 = arith.cmpi eq, %76, %105 : vector<8x128xi32>
      %c0_44 = arith.constant 0 : index
      %c0_45 = arith.constant 0 : index
      %107 = vector.load %arg8[%c0_44, %c0_45] : memref<5x256xf32, #tpu.memory_space<vmem>>, vector<5x256xf32>
      %108 = vector.shape_cast %107 : vector<5x256xf32> to vector<1x5x256xf32>
      %cst_46 = arith.constant dense<0.000000e+00> : vector<1xf32>
      %109 = vector.multi_reduction <add>, %108, %cst_46 [1, 2] : vector<1x5x256xf32> to vector<1xf32>
      %110 = vector.shape_cast %109 : vector<1xf32> to vector<1x1x1xf32>
      %111 = vector.extract %110[0, 0, 0] : f32 from vector<1x1x1xf32>
      %112 = vector.broadcast %111 : f32 to vector<8x128xf32>
      %113 = arith.select %106, %112, %104 : vector<8x128xi1>, vector<8x128xf32>
      %c0_47 = arith.constant 0 : index
      %c0_48 = arith.constant 0 : index
      %c0_49 = arith.constant 0 : index
      %114 = vector.load %arg4[%c0_47, %c0_48, %c0_49] : memref<1x8x128xf32, #tpu.memory_space<vmem>>, vector<1x8x128xf32>
      %115 = vector.shape_cast %114 : vector<1x8x128xf32> to vector<8x128xf32>
      %116 = vector.shape_cast %113 : vector<8x128xf32> to vector<1x8x128xf32>
      tpu.vector_store %arg4[%c0_47, %c0_48, %c0_49], %116 {strides = array<i32>} : memref<1x8x128xf32, #tpu.memory_space<vmem>>, vector<1x8x128xf32>,
    } else {
    }
    return
  }
  func.func @transform_0(%arg0: i32, %arg1: i32) -> (i32, i32, i32) {
    %c0_i32 = arith.constant 0 : i32
    %c0_i32_0 = arith.constant 0 : i32
    return %arg0, %c0_i32, %arg1 : i32, i32, i32
  }
  func.func @transform_1(%arg0: i32, %arg1: i32) -> (i32, i32, i32) {
    %c0_i32 = arith.constant 0 : i32
    %c0_i32_0 = arith.constant 0 : i32
    return %arg0, %c0_i32, %arg1 : i32, i32, i32
  }
  func.func @transform_2(%arg0: i32, %arg1: i32) -> (i32, i32, i32) {
    %c0_i32 = arith.constant 0 : i32
    %c0_i32_0 = arith.constant 0 : i32
    %c0_i32_1 = arith.constant 0 : i32
    return %arg0, %c0_i32, %c0_i32_0 : i32, i32, i32
  }
}

module attributes {stable_mosaic.version = 11 : i64} {
  func.func @_focal_dice_kernel(%arg0: i32, %arg1: i32, %arg2: memref<1x5x256xf32, #tpu.memory_space<vmem>>, %arg3: memref<1x5x256xbf16, #tpu.memory_space<vmem>>, %arg4: memref<1x8x128xf32, #tpu.memory_space<vmem>>, %arg5: memref<5x256xf32, #tpu.memory_space<vmem>>, %arg6: memref<5x256xf32, #tpu.memory_space<vmem>>, %arg7: memref<5x256xf32, #tpu.memory_space<vmem>>, %arg8: memref<5x256xf32, #tpu.memory_space<vmem>>) attributes {dimension_semantics = [#tpu.dimension_semantics<parallel>, #tpu.dimension_semantics<arbitrary>], iteration_bounds = array<i64: 2, 1>, scalar_prefetch = 0 : i64, scratch_operands = 4 : i64, tpu.core_type = #tpu.core_type<tc>, window_params = [{transform_indices = @transform_0, window_bounds = array<i64: 1, 5, 256>}, {transform_indices = @transform_1, window_bounds = array<i64: 1, 5, 256>}, {transform_indices = @transform_2, window_bounds = array<i64: 1, 8, 128>}]} {
    %c0_i32 = arith.constant 0 : i32
    %0 = arith.cmpi eq, %arg1, %c0_i32 : i32
    %1 = arith.extui %0 : i1 to i32
    %c0_i32_0 = arith.constant 0 : i32
    %2 = arith.cmpi ne, %1, %c0_i32_0 : i32
    scf.if %2 {
      %cst_35 = arith.constant 0.000000e+00 : f32
      %85 = vector.broadcast %cst_35 : f32 to vector<5x256xf32>
      %c0_36 = arith.constant 0 : index
      %c0_37 = arith.constant 0 : index
      %86 = vector.load %arg5[%c0_36, %c0_37] : memref<5x256xf32, #tpu.memory_space<vmem>>, vector<5x256xf32>
      tpu.vector_store %arg5[%c0_36, %c0_37], %85 {strides = array<i32>} : memref<5x256xf32, #tpu.memory_space<vmem>>, vector<5x256xf32>,
      %cst_38 = arith.constant 0.000000e+00 : f32
      %87 = vector.broadcast %cst_38 : f32 to vector<5x256xf32>
      %c0_39 = arith.constant 0 : index
      %c0_40 = arith.constant 0 : index
      %88 = vector.load %arg6[%c0_39, %c0_40] : memref<5x256xf32, #tpu.memory_space<vmem>>, vector<5x256xf32>
      tpu.vector_store %arg6[%c0_39, %c0_40], %87 {strides = array<i32>} : memref<5x256xf32, #tpu.memory_space<vmem>>, vector<5x256xf32>,
      %cst_41 = arith.constant 0.000000e+00 : f32
      %89 = vector.broadcast %cst_41 : f32 to vector<5x256xf32>
      %c0_42 = arith.constant 0 : index
      %c0_43 = arith.constant 0 : index
      %90 = vector.load %arg7[%c0_42, %c0_43] : memref<5x256xf32, #tpu.memory_space<vmem>>, vector<5x256xf32>
      tpu.vector_store %arg7[%c0_42, %c0_43], %89 {strides = array<i32>} : memref<5x256xf32, #tpu.memory_space<vmem>>, vector<5x256xf32>,
      %cst_44 = arith.constant 0.000000e+00 : f32
      %91 = vector.broadcast %cst_44 : f32 to vector<5x256xf32>
      %c0_45 = arith.constant 0 : index
      %c0_46 = arith.constant 0 : index
      %92 = vector.load %arg8[%c0_45, %c0_46] : memref<5x256xf32, #tpu.memory_space<vmem>>, vector<5x256xf32>
      tpu.vector_store %arg8[%c0_45, %c0_46], %91 {strides = array<i32>} : memref<5x256xf32, #tpu.memory_space<vmem>>, vector<5x256xf32>,
    } else {
    }
    %c0 = arith.constant 0 : index
    %c0_1 = arith.constant 0 : index
    %c0_2 = arith.constant 0 : index
    %3 = vector.load %arg2[%c0, %c0_1, %c0_2] : memref<1x5x256xf32, #tpu.memory_space<vmem>>, vector<1x5x256xf32>
    %4 = vector.shape_cast %3 : vector<1x5x256xf32> to vector<5x256xf32>
    %c0_3 = arith.constant 0 : index
    %c0_4 = arith.constant 0 : index
    %c0_5 = arith.constant 0 : index
    %5 = vector.load %arg3[%c0_3, %c0_4, %c0_5] : memref<1x5x256xbf16, #tpu.memory_space<vmem>>, vector<1x5x256xbf16>
    %6 = vector.shape_cast %5 : vector<1x5x256xbf16> to vector<5x256xbf16>
    %7 = arith.extf %6 : vector<5x256xbf16> to vector<5x256xf32>
    %8 = tpu.iota {dimensions = array<i32: 1>} : vector<1x256xi32>
    %c256_i32 = arith.constant 256 : i32
    %9 = arith.muli %arg1, %c256_i32 : i32
    %10 = vector.broadcast %9 : i32 to vector<1x256xi32>
    %11 = arith.addi %8, %10 : vector<1x256xi32>
    %c256_i32_6 = arith.constant 256 : i32
    %12 = vector.broadcast %c256_i32_6 : i32 to vector<1x256xi32>
    %13 = arith.cmpi slt, %11, %12 : vector<1x256xi32>
    %cst = arith.constant 0.000000e+00 : f32
    %14 = vector.shape_cast %13 : vector<1x256xi1> to vector<1x256xi1>
    %15 = vector.broadcast %14 : vector<1x256xi1> to vector<5x256xi1>
    %16 = vector.broadcast %cst : f32 to vector<5x256xf32>
    %17 = arith.select %15, %7, %16 : vector<5x256xi1>, vector<5x256xf32>
    %cst_7 = arith.constant 0.000000e+00 : f32
    %18 = vector.shape_cast %13 : vector<1x256xi1> to vector<1x256xi1>
    %19 = vector.broadcast %18 : vector<1x256xi1> to vector<5x256xi1>
    %20 = vector.broadcast %cst_7 : f32 to vector<5x256xf32>
    %21 = arith.select %19, %4, %20 : vector<5x256xi1>, vector<5x256xf32>
    %cst_8 = arith.constant dense<0xFF800000> : vector<256xf32>
    %22 = vector.multi_reduction <maximumf>, %21, %cst_8 [0] : vector<5x256xf32> to vector<256xf32>
    %23 = vector.shape_cast %22 : vector<256xf32> to vector<1x256xf32>
    %24 = vector.broadcast %23 : vector<1x256xf32> to vector<5x256xf32>
    %25 = arith.subf %21, %24 : vector<5x256xf32>
    %26 = math.exp %25 : vector<5x256xf32>
    %cst_9 = arith.constant dense<0.000000e+00> : vector<256xf32>
    %27 = vector.multi_reduction <add>, %26, %cst_9 [0] : vector<5x256xf32> to vector<256xf32>
    %28 = vector.shape_cast %27 : vector<256xf32> to vector<1x256xf32>
    %29 = vector.broadcast %28 : vector<1x256xf32> to vector<5x256xf32>
    %30 = arith.divf %26, %29 : vector<5x256xf32>
    %31 = vector.extract_strided_slice %17 {offsets = [1, 0], sizes = [4, 256], strides = [1, 1]} : vector<5x256xf32> to vector<4x256xf32>
    %cst_10 = arith.constant dense<0xFF800000> : vector<256xf32>
    %32 = vector.multi_reduction <maximumf>, %31, %cst_10 [0] : vector<4x256xf32> to vector<256xf32>
    %33 = vector.shape_cast %32 : vector<256xf32> to vector<1x256xf32>
    %34 = vector.extract_strided_slice %17 {offsets = [0, 0], sizes = [1, 256], strides = [1, 1]} : vector<5x256xf32> to vector<1x256xf32>
    %35 = arith.cmpf ogt, %33, %34 : vector<1x256xf32>
    %36 = arith.extui %35 : vector<1x256xi1> to vector<1x256xi32>
    %37 = arith.sitofp %36 : vector<1x256xi32> to vector<1x256xf32>
    %cst_11 = arith.constant 1.000000e+00 : f32
    %38 = vector.broadcast %cst_11 : f32 to vector<5x256xf32>
    %39 = arith.subf %38, %30 : vector<5x256xf32>
    %40 = arith.mulf %39, %39 : vector<5x256xf32>
    %cst_12 = arith.constant -7.500000e-01 : f32
    %41 = vector.broadcast %cst_12 : f32 to vector<5x256xf32>
    %42 = arith.mulf %41, %40 : vector<5x256xf32>
    %cst_13 = arith.constant 9.99999993E-9 : f32
    %43 = vector.broadcast %cst_13 : f32 to vector<5x256xf32>
    %44 = arith.addf %30, %43 : vector<5x256xf32>
    %45 = math.log %44 : vector<5x256xf32>
    %46 = arith.mulf %42, %45 : vector<5x256xf32>
    %47 = arith.mulf %30, %30 : vector<5x256xf32>
    %cst_14 = arith.constant -2.500000e-01 : f32
    %48 = vector.broadcast %cst_14 : f32 to vector<5x256xf32>
    %49 = arith.mulf %48, %47 : vector<5x256xf32>
    %cst_15 = arith.constant 9.99999993E-9 : f32
    %50 = vector.broadcast %cst_15 : f32 to vector<5x256xf32>
    %51 = arith.addf %39, %50 : vector<5x256xf32>
    %52 = math.log %51 : vector<5x256xf32>
    %53 = arith.mulf %49, %52 : vector<5x256xf32>
    %54 = arith.mulf %46, %17 : vector<5x256xf32>
    %cst_16 = arith.constant 1.000000e+00 : f32
    %55 = vector.broadcast %cst_16 : f32 to vector<5x256xf32>
    %56 = arith.subf %55, %17 : vector<5x256xf32>
    %57 = arith.mulf %53, %56 : vector<5x256xf32>
    %58 = arith.addf %54, %57 : vector<5x256xf32>
    %c0_17 = arith.constant 0 : index
    %c0_18 = arith.constant 0 : index
    %59 = vector.load %arg5[%c0_17, %c0_18] : memref<5x256xf32, #tpu.memory_space<vmem>>, vector<5x256xf32>
    %60 = vector.broadcast %37 : vector<1x256xf32> to vector<5x256xf32>
    %61 = arith.mulf %58, %60 : vector<5x256xf32>
    %62 = arith.addf %59, %61 : vector<5x256xf32>
    %c0_19 = arith.constant 0 : index
    %c0_20 = arith.constant 0 : index
    %63 = vector.load %arg5[%c0_19, %c0_20] : memref<5x256xf32, #tpu.memory_space<vmem>>, vector<5x256xf32>
    tpu.vector_store %arg5[%c0_19, %c0_20], %62 {strides = array<i32>} : memref<5x256xf32, #tpu.memory_space<vmem>>, vector<5x256xf32>,
    %c0_21 = arith.constant 0 : index
    %c0_22 = arith.constant 0 : index
    %64 = vector.load %arg6[%c0_21, %c0_22] : memref<5x256xf32, #tpu.memory_space<vmem>>, vector<5x256xf32>
    %65 = arith.mulf %30, %17 : vector<5x256xf32>
    %66 = vector.broadcast %37 : vector<1x256xf32> to vector<5x256xf32>
    %67 = arith.mulf %65, %66 : vector<5x256xf32>
    %68 = arith.addf %64, %67 : vector<5x256xf32>
    %c0_23 = arith.constant 0 : index
    %c0_24 = arith.constant 0 : index
    %69 = vector.load %arg6[%c0_23, %c0_24] : memref<5x256xf32, #tpu.memory_space<vmem>>, vector<5x256xf32>
    tpu.vector_store %arg6[%c0_23, %c0_24], %68 {strides = array<i32>} : memref<5x256xf32, #tpu.memory_space<vmem>>, vector<5x256xf32>,
    %c0_25 = arith.constant 0 : index
    %c0_26 = arith.constant 0 : index
    %70 = vector.load %arg7[%c0_25, %c0_26] : memref<5x256xf32, #tpu.memory_space<vmem>>, vector<5x256xf32>
    %71 = arith.mulf %30, %30 : vector<5x256xf32>
    %72 = vector.broadcast %37 : vector<1x256xf32> to vector<5x256xf32>
    %73 = arith.mulf %71, %72 : vector<5x256xf32>
    %74 = arith.addf %70, %73 : vector<5x256xf32>
    %c0_27 = arith.constant 0 : index
    %c0_28 = arith.constant 0 : index
    %75 = vector.load %arg7[%c0_27, %c0_28] : memref<5x256xf32, #tpu.memory_space<vmem>>, vector<5x256xf32>
    tpu.vector_store %arg7[%c0_27, %c0_28], %74 {strides = array<i32>} : memref<5x256xf32, #tpu.memory_space<vmem>>, vector<5x256xf32>,
    %c0_29 = arith.constant 0 : index
    %c0_30 = arith.constant 0 : index
    %76 = vector.load %arg8[%c0_29, %c0_30] : memref<5x256xf32, #tpu.memory_space<vmem>>, vector<5x256xf32>
    %77 = arith.mulf %17, %17 : vector<5x256xf32>
    %78 = vector.broadcast %37 : vector<1x256xf32> to vector<5x256xf32>
    %79 = arith.mulf %77, %78 : vector<5x256xf32>
    %80 = arith.addf %76, %79 : vector<5x256xf32>
    %c0_31 = arith.constant 0 : index
    %c0_32 = arith.constant 0 : index
    %81 = vector.load %arg8[%c0_31, %c0_32] : memref<5x256xf32, #tpu.memory_space<vmem>>, vector<5x256xf32>
    tpu.vector_store %arg8[%c0_31, %c0_32], %80 {strides = array<i32>} : memref<5x256xf32, #tpu.memory_space<vmem>>, vector<5x256xf32>,
    %c0_i32_33 = arith.constant 0 : i32
    %82 = arith.cmpi eq, %arg1, %c0_i32_33 : i32
    %83 = arith.extui %82 : i1 to i32
    %c0_i32_34 = arith.constant 0 : i32
    %84 = arith.cmpi ne, %83, %c0_i32_34 : i32
    scf.if %84 {
      %85 = tpu.iota {dimensions = array<i32: 0>} : vector<8x128xi32>
      %c0_i32_35 = arith.constant 0 : i32
      %86 = vector.broadcast %c0_i32_35 : i32 to vector<8x128xi32>
      %87 = arith.cmpi eq, %85, %86 : vector<8x128xi32>
      %c0_36 = arith.constant 0 : index
      %c0_37 = arith.constant 0 : index
      %88 = vector.load %arg5[%c0_36, %c0_37] : memref<5x256xf32, #tpu.memory_space<vmem>>, vector<5x256xf32>
      %89 = vector.shape_cast %88 : vector<5x256xf32> to vector<1x5x256xf32>
      %cst_38 = arith.constant dense<0.000000e+00> : vector<1xf32>
      %90 = vector.multi_reduction <add>, %89, %cst_38 [1, 2] : vector<1x5x256xf32> to vector<1xf32>
      %91 = vector.shape_cast %90 : vector<1xf32> to vector<1x1x1xf32>
      %92 = vector.extract %91[0, 0, 0] : f32 from vector<1x1x1xf32>
      %cst_39 = arith.constant 0.000000e+00 : f32
      %93 = vector.broadcast %92 : f32 to vector<8x128xf32>
      %94 = vector.broadcast %cst_39 : f32 to vector<8x128xf32>
      %95 = arith.select %87, %93, %94 : vector<8x128xi1>, vector<8x128xf32>
      %c1_i32 = arith.constant 1 : i32
      %96 = vector.broadcast %c1_i32 : i32 to vector<8x128xi32>
      %97 = arith.cmpi eq, %85, %96 : vector<8x128xi32>
      %c0_40 = arith.constant 0 : index
      %c0_41 = arith.constant 0 : index
      %98 = vector.load %arg6[%c0_40, %c0_41] : memref<5x256xf32, #tpu.memory_space<vmem>>, vector<5x256xf32>
      %99 = vector.shape_cast %98 : vector<5x256xf32> to vector<1x5x256xf32>
      %cst_42 = arith.constant dense<0.000000e+00> : vector<1xf32>
      %100 = vector.multi_reduction <add>, %99, %cst_42 [1, 2] : vector<1x5x256xf32> to vector<1xf32>
      %101 = vector.shape_cast %100 : vector<1xf32> to vector<1x1x1xf32>
      %102 = vector.extract %101[0, 0, 0] : f32 from vector<1x1x1xf32>
      %103 = vector.broadcast %102 : f32 to vector<8x128xf32>
      %104 = arith.select %97, %103, %95 : vector<8x128xi1>, vector<8x128xf32>
      %c2_i32 = arith.constant 2 : i32
      %105 = vector.broadcast %c2_i32 : i32 to vector<8x128xi32>
      %106 = arith.cmpi eq, %85, %105 : vector<8x128xi32>
      %c0_43 = arith.constant 0 : index
      %c0_44 = arith.constant 0 : index
      %107 = vector.load %arg7[%c0_43, %c0_44] : memref<5x256xf32, #tpu.memory_space<vmem>>, vector<5x256xf32>
      %108 = vector.shape_cast %107 : vector<5x256xf32> to vector<1x5x256xf32>
      %cst_45 = arith.constant dense<0.000000e+00> : vector<1xf32>
      %109 = vector.multi_reduction <add>, %108, %cst_45 [1, 2] : vector<1x5x256xf32> to vector<1xf32>
      %110 = vector.shape_cast %109 : vector<1xf32> to vector<1x1x1xf32>
      %111 = vector.extract %110[0, 0, 0] : f32 from vector<1x1x1xf32>
      %112 = vector.broadcast %111 : f32 to vector<8x128xf32>
      %113 = arith.select %106, %112, %104 : vector<8x128xi1>, vector<8x128xf32>
      %c3_i32 = arith.constant 3 : i32
      %114 = vector.broadcast %c3_i32 : i32 to vector<8x128xi32>
      %115 = arith.cmpi eq, %85, %114 : vector<8x128xi32>
      %c0_46 = arith.constant 0 : index
      %c0_47 = arith.constant 0 : index
      %116 = vector.load %arg8[%c0_46, %c0_47] : memref<5x256xf32, #tpu.memory_space<vmem>>, vector<5x256xf32>
      %117 = vector.shape_cast %116 : vector<5x256xf32> to vector<1x5x256xf32>
      %cst_48 = arith.constant dense<0.000000e+00> : vector<1xf32>
      %118 = vector.multi_reduction <add>, %117, %cst_48 [1, 2] : vector<1x5x256xf32> to vector<1xf32>
      %119 = vector.shape_cast %118 : vector<1xf32> to vector<1x1x1xf32>
      %120 = vector.extract %119[0, 0, 0] : f32 from vector<1x1x1xf32>
      %121 = vector.broadcast %120 : f32 to vector<8x128xf32>
      %122 = arith.select %115, %121, %113 : vector<8x128xi1>, vector<8x128xf32>
      %c0_49 = arith.constant 0 : index
      %c0_50 = arith.constant 0 : index
      %c0_51 = arith.constant 0 : index
      %123 = vector.load %arg4[%c0_49, %c0_50, %c0_51] : memref<1x8x128xf32, #tpu.memory_space<vmem>>, vector<1x8x128xf32>
      %124 = vector.shape_cast %123 : vector<1x8x128xf32> to vector<8x128xf32>
      %125 = vector.shape_cast %122 : vector<8x128xf32> to vector<1x8x128xf32>
      tpu.vector_store %arg4[%c0_49, %c0_50, %c0_51], %125 {strides = array<i32>} : memref<1x8x128xf32, #tpu.memory_space<vmem>>, vector<1x8x128xf32>,
    } else {
    }
    return
  }
  func.func @transform_0(%arg0: i32, %arg1: i32) -> (i32, i32, i32) {
    %c0_i32 = arith.constant 0 : i32
    %c0_i32_0 = arith.constant 0 : i32
    return %arg0, %c0_i32, %arg1 : i32, i32, i32
  }
  func.func @transform_1(%arg0: i32, %arg1: i32) -> (i32, i32, i32) {
    %c0_i32 = arith.constant 0 : i32
    %c0_i32_0 = arith.constant 0 : i32
    return %arg0, %c0_i32, %arg1 : i32, i32, i32
  }
  func.func @transform_2(%arg0: i32, %arg1: i32) -> (i32, i32, i32) {
    %c0_i32 = arith.constant 0 : i32
    %c0_i32_0 = arith.constant 0 : i32
    %c0_i32_1 = arith.constant 0 : i32
    return %arg0, %c0_i32, %c0_i32_0 : i32, i32, i32
  }
}

</mosaic_0001>

<llo_original>
// kernel: total_loss_forward.2
$region0: #{total_loss_forward.2}
  #allocation0 [shape = 'u32[]', space=smem, size = 0x4, offset = 0x4, fixed_abs, tag = 'smem constant byte address 0x4 - core index']
  #allocation1 [shape = 'u32[72,128]{1,0:T(1,128)}', space=vmem, size = 0x9000, scoped, tag = 'internal scratch']
  #allocation2 [shape = 'f32[5,256]{1,0:T(8,128)}', space=vmem, size = 0x2000, scoped, tag = 'scratch operand']
  #allocation3 [shape = 'f32[5,256]{1,0:T(8,128)}', space=vmem, size = 0x2000, scoped, tag = 'scratch operand']
  #allocation4 [shape = 'f32[5,256]{1,0:T(8,128)}', space=vmem, size = 0x2000, scoped, tag = 'scratch operand']
  #allocation5 [shape = 'f32[5,256]{1,0:T(8,128)}', space=vmem, size = 0x2000, scoped, tag = 'scratch operand']
  %s0 = inlined_call_operand.vmem [shape: f32[2,5,256], index: 0, kind: input, shape index: {}]
  %s1 = inlined_call_operand.vmem [shape: bf16[2,5,256], index: 1, kind: input, shape index: {}]
  %s2 = inlined_call_operand.vmem [shape: f32[2,8,128], index: 2, kind: output, shape index: {}]
  %s3 = sld [smem:[#allocation0]]
  $region49: #{total_loss_forward.2} parent=0
    _
  %s5 = ssub.s32 1, %s3
  %s6 = scalar_select 0, %s5, %s3
  loop: start=0, step=1, limit=4
  $region2: #{total_loss_forward.2} parent=0 // loop_pre_header
    _
  $region3: #{total_loss_forward.2} parent=0 // loop_header
    %s8 = sphi 0, %s12
    %p9 = scmp.ge.s32.totalorder %s8, 4
    %s15 = sphi 0, %s27
    %s16 = sphi 0, %s23
    %s17 = sphi 0, %s15
    %s18 = sphi 0, %s16
    %s19 = sphi 0, %s17
    %s20 = sphi 0, %s18
    %s32 = sphi 0, %s34
    %s35 = sphi 0, %s32
    %s36 = sphi 0, %s35
    %s52 = sphi 0, %s36
    %s60 = sphi 0, %s62
    %s63 = sphi 0, %s60
    %s64 = sphi 0, %s63
    %s80 = sphi 0, %s64
    %s86 = sphi 0, %s88
    %s89 = sphi 0, %s86
    %s90 = sphi 0, %s89
    %s106 = sphi 0, %s90
  $region4: #{total_loss_forward.2} parent=0 // loop_header_branch
    %11 = sbr.rel (%p9) target = $region8
  $region5: #{total_loss_forward.2} parent=0 // loop_body
    %s13 = ssub.s32 %s8, 1
    %s14 = ssub.s32 %s8, 2
    %s21 = sadd.s32 1, %s16
    %p22 = scmp.ge.s32.totalorder %s21, 1
    %s23 = scalar_select %p22, 0, %s21
    %s24 = sadd.s32 1, %s15
    %s25 = scalar_select %p22, %s24, %s15
    %p26 = scmp.ge.s32.totalorder %s25, 2
    %s27 = scalar_select %p26, 0, %s25
    %s28 = ssub.s32 %s15, %s27
    %s29 = ssub.s32 %s16, %s23
    %s30 = sor.u32 %s28, %s29
    %p31 = scmp.eq.s32.totalorder %s30, 0
    %s33 = sadd.s32 %s32, 1
    %s34 = scalar_select %p31, %s32, %s33
    %p37 = pneg %p31
    %p38 = scmp.eq.s32.totalorder %s8, 1
    %p39 = por %p37, %p38
    %p40 = scmp.ne.s32.totalorder %s32, %s35
    %p41 = scmp.eq.s32.totalorder %s8, 0
    %p42 = por %p40, %p41
    %p43 = scmp.ne.s32.totalorder %s32, %s35
    %p44 = scmp.eq.s32.totalorder %s13, 1
    %p45 = por %p43, %p44
    %p46 = scmp.ne.s32.totalorder %s35, %s36
    %p47 = scmp.eq.s32.totalorder %s13, 0
    %p48 = por %p46, %p47
    %p49 = scmp.ne.s32.totalorder %s35, %s36
    %p50 = scmp.eq.s32.totalorder %s14, 1
    %p51 = por %p49, %p50
    %p53 = scmp.ne.s32.totalorder %s36, %s52
    %p54 = scmp.eq.s32.totalorder %s14, 0
    %p55 = por %p53, %p54
    %s56 = ssub.s32 %s15, %s27
    %s57 = ssub.s32 %s16, %s23
    %s58 = sor.u32 %s56, %s57
    %p59 = scmp.eq.s32.totalorder %s58, 0
    %s61 = sadd.s32 %s60, 1
    %s62 = scalar_select %p59, %s60, %s61
    %p65 = pneg %p59
    %p66 = scmp.eq.s32.totalorder %s8, 1
    %p67 = por %p65, %p66
    %p68 = scmp.ne.s32.totalorder %s60, %s63
    %p69 = scmp.eq.s32.totalorder %s8, 0
    %p70 = por %p68, %p69
    %p71 = scmp.ne.s32.totalorder %s60, %s63
    %p72 = scmp.eq.s32.totalorder %s13, 1
    %p73 = por %p71, %p72
    %p74 = scmp.ne.s32.totalorder %s63, %s64
    %p75 = scmp.eq.s32.totalorder %s13, 0
    %p76 = por %p74, %p75
    %p77 = scmp.ne.s32.totalorder %s63, %s64
    %p78 = scmp.eq.s32.totalorder %s14, 1
    %p79 = por %p77, %p78
    %p81 = scmp.ne.s32.totalorder %s64, %s80
    %p82 = scmp.eq.s32.totalorder %s14, 0
    %p83 = por %p81, %p82
    %s84 = ssub.s32 %s15, %s27
    %p85 = scmp.eq.s32.totalorder %s84, 0
    %s87 = sadd.s32 %s86, 1
    %s88 = scalar_select %p85, %s86, %s87
    %p91 = pneg %p85
    %p92 = scmp.eq.s32.totalorder %s8, 1
    %p93 = por %p91, %p92
    %p94 = scmp.ne.s32.totalorder %s86, %s89
    %p95 = scmp.eq.s32.totalorder %s8, 0
    %p96 = por %p94, %p95
    %p97 = scmp.ne.s32.totalorder %s86, %s89
    %p98 = scmp.eq.s32.totalorder %s13, 1
    %p99 = por %p97, %p98
    %p100 = scmp.ne.s32.totalorder %s89, %s90
    %p101 = scmp.eq.s32.totalorder %s13, 0
    %p102 = por %p100, %p101
    %p103 = scmp.ne.s32.totalorder %s89, %s90
    %p104 = scmp.eq.s32.totalorder %s14, 1
    %p105 = por %p103, %p104
    %p107 = scmp.ne.s32.totalorder %s90, %s106
    %p108 = scmp.eq.s32.totalorder %s14, 0
    %p109 = por %p107, %p108
    %p110 = scmp.le.s32.totalorder 1, %s8
    %p111 = scmp.lt.s32.totalorder %s8, 3
    %p112 = pnand %p110, %p111
    %p113 = pneg %p112
    // Predicated region
    $region9: #{total_loss_forward.2} parent=5 // pred_check
      _
    $region10: #{total_loss_forward.2} parent=5 // pred_check_branch
      %115 = sbr.rel (%p112) target = $region12
    $region11: #{total_loss_forward.2} parent=5 // pred_region
      %s116 = ssub.s32 %s8, 1
    $region12: #{total_loss_forward.2} parent=5 // pred_fallthru
      _
    %p117 = scmp.lt.s32.totalorder %s8, 2
    // Predicated region
    $region13: #{total_loss_forward.2} parent=5 // pred_check
      %p118 = pneg %p117
    $region14: #{total_loss_forward.2} parent=5 // pred_check_branch
      %120 = sbr.rel (%p118) target = $region16
    $region15: #{total_loss_forward.2} parent=5 // pred_region
      // Predicated region
      $region17: #{total_loss_forward.2} parent=15 // pred_check
        %p121 = pneg %p42
      $region18: #{total_loss_forward.2} parent=15 // pred_check_branch
        %123 = sbr.rel (%p121) target = $region20
      $region19: #{total_loss_forward.2} parent=15 // pred_region
        %s124 = smul.u32 2, %s16
        %p125 = scmp.lt.s32.totalorder %s15, 1
        %s126 = scalar_select %p125, %s15, 1
        %p127 = scmp.lt.s32.totalorder %s124, 1
        %s128 = scalar_select %p127, %s124, 1
        %s129 = smul.addr %s126, 2
        %s130 = sadd.s32 %s128, %s129
        %s131 = smul.addr %s130, 8
        %s132 = scalar_lea.vmem %s0, %s131
        %s133 = smul.u32 2, %s16
      $region20: #{total_loss_forward.2} parent=15 // pred_fallthru
        _
      // Predicated region
      $region21: #{total_loss_forward.2} parent=15 // pred_check
        %p134 = pneg %p70
      $region22: #{total_loss_forward.2} parent=15 // pred_check_branch
        %136 = sbr.rel (%p134) target = $region24
      $region23: #{total_loss_forward.2} parent=15 // pred_region
        %s137 = smul.u32 2, %s16
        %p138 = scmp.lt.s32.totalorder %s15, 1
        %s139 = scalar_select %p138, %s15, 1
        %p140 = scmp.lt.s32.totalorder %s137, 1
        %s141 = scalar_select %p140, %s137, 1
        %s142 = smul.addr %s139, 2
        %s143 = sadd.s32 %s141, %s142
        %s144 = smul.addr %s143, 4
        %s145 = scalar_lea.vmem %s1, %s144
        %s146 = smul.u32 2, %s16
      $region24: #{total_loss_forward.2} parent=15 // pred_fallthru
        _
    $region16: #{total_loss_forward.2} parent=5 // pred_fallthru
      _
    %p147 = scmp.le.s32.totalorder 1, %s8
    %p148 = scmp.lt.s32.totalorder %s8, 3
    %p149 = pnand %p147, %p148
    %p150 = pneg %p149
    // Predicated region
    $region25: #{total_loss_forward.2} parent=5 // pred_check
      _
    $region26: #{total_loss_forward.2} parent=5 // pred_check_branch
      %152 = sbr.rel (%p149) target = $region28
    $region27: #{total_loss_forward.2} parent=5 // pred_region
      %s153 = ssub.s32 %s8, 1
      %s154 = smul.u32 2, %s18
      %p155 = scmp.lt.s32.totalorder %s17, 1
      %s156 = scalar_select %p155, %s17, 1
      %p157 = scmp.lt.s32.totalorder %s154, 1
      %s158 = scalar_select %p157, %s154, 1
      %s159 = smul.addr %s156, 2
      %s160 = sadd.s32 %s158, %s159
      %s161 = smul.addr %s160, 8
      %s162 = scalar_lea.vmem %s0, %s161
      %p163 = pneg %p48
      %p164 = pneg %p45
      %s165 = smul.u32 2, %s18
      %p166 = scmp.lt.s32.totalorder %s17, 1
      %s167 = scalar_select %p166, %s17, 1
      %p168 = scmp.lt.s32.totalorder %s165, 1
      %s169 = scalar_select %p168, %s165, 1
      %s170 = smul.addr %s167, 2
      %s171 = sadd.s32 %s169, %s170
      %s172 = smul.addr %s171, 4
      %s173 = scalar_lea.vmem %s1, %s172
      %p174 = pneg %p76
      %p175 = pneg %p73
      %p176 = pneg %p102
      %p177 = pneg %p99
      %p178 = scmp.lt.s32.totalorder %s17, 1
      %s179 = scalar_select %p178, %s17, 1
      %s180 = smul.addr %s179, 8
      %s181 = scalar_lea.vmem %s2, %s180
      %s182 = smul.u32 2, %s18
      %p183 = scmp.lt.s32.totalorder %s17, 1
      %s184 = scalar_select %p183, %s17, 1
      %p185 = scmp.lt.s32.totalorder %s182, 1
      %s186 = scalar_select %p185, %s182, 1
      %s187 = smul.addr %s184, 2
      %s188 = sadd.s32 %s186, %s187
      %s189 = smul.addr %s188, 8
      %s190 = scalar_lea.vmem %s0, %s189
      %s191 = smul.u32 2, %s18
      %s192 = smul.u32 2, %s18
      %p193 = scmp.lt.s32.totalorder %s17, 1
      %s194 = scalar_select %p193, %s17, 1
      %p195 = scmp.lt.s32.totalorder %s192, 1
      %s196 = scalar_select %p195, %s192, 1
      %s197 = smul.addr %s194, 2
      %s198 = sadd.s32 %s196, %s197
      %s199 = smul.addr %s198, 4
      %s200 = scalar_lea.vmem %s1, %s199
      %s201 = smul.u32 2, %s18
      %p202 = scmp.lt.s32.totalorder %s17, 1
      %s203 = scalar_select %p202, %s17, 1
      %s204 = smul.addr %s203, 8
      %s205 = scalar_lea.vmem %s2, %s204
      %p206 = scmp.eq.s32.totalorder %s18, 0
      // Predicated region
      $region29: #{total_loss_forward.2} parent=27 // pred_check
        %p207 = pneg %p206
      $region30: #{total_loss_forward.2} parent=27 // pred_check_branch
        %209 = sbr.rel (%p207) target = $region32
      $region31: #{total_loss_forward.2} parent=27 // pred_region
        %210 = vst [vmem:[#allocation2] sm:$0x1f] 0.0
        %211 = vst [vmem:[#allocation2 + $0x8] sm:$0x1f] 0.0
        %212 = vst [vmem:[#allocation3] sm:$0x1f] 0.0
        %213 = vst [vmem:[#allocation3 + $0x8] sm:$0x1f] 0.0
        %214 = vst [vmem:[#allocation4] sm:$0x1f] 0.0
        %215 = vst [vmem:[#allocation4 + $0x8] sm:$0x1f] 0.0
        %216 = vst [vmem:[#allocation5] sm:$0x1f] 0.0
        %217 = vst [vmem:[#allocation5 + $0x8] sm:$0x1f] 0.0
      $region32: #{total_loss_forward.2} parent=27 // pred_fallthru
        _
      %v218 = vld [vmem:[%s190] sm:$0x1f]
      %v219 = vld [vmem:[%s190 + $0x8] sm:$0x1f]
      %v220 = vld [vmem:[%s200] sm:$0x77]
      %v221 = vunpack.c.l.bf16 %v220
      %v222 = vunpack.c.h.bf16 %v220
      %v223 = vlaneseq
      %v224 = vand.u32 %v223, 127
      %v225 = vadd.s32 %v224, 128
      %s226 = smul.u32 %s18, 256
      %v227 = vstv %s226
      %v228 = vadd.s32 %v224, %v227
      %v229 = vadd.s32 %v225, %v227
      %vm230 = vcmp.lt.s32.totalorder %v228, 256
      %vm231 = vcmp.lt.s32.totalorder %v229, 256
      %v232 = vsel %vm230, 1, 0
      %v233 = vsel %vm231, 1, 0
      %vm234 = vcmp.eq.s32.totalorder %v232, 1
      %vm235 = vcmp.eq.s32.totalorder %v233, 1
      %v236 = vsel %vm234, %v221, 0.0
      %v237 = vsel %vm235, %v222, 0.0
      %v238 = vsel %vm234, %v218, 0.5
      %v239 = vsel %vm235, %v219, 0.5
      %vm240 = vcmask 1044481
      %v241 = vsel %vm240, %v236, -inf
      %v242 = vrot.slane %v241, 4
      %v243 = vmax.f32 %v241, %v242
      %v244 = vrot.slane %v243, 2
      %v245 = vmax.f32 %v243, %v244
      %v246 = vrot.slane %v245, 1
      %v247 = vmax.f32 %v245, %v246
      %v248 = vsel %vm240, %v237, -inf
      %v249 = vrot.slane %v248, 4
      %v250 = vmax.f32 %v248, %v249
      %v251 = vrot.slane %v250, 2
      %v252 = vmax.f32 %v250, %v251
      %v253 = vrot.slane %v252, 1
      %v254 = vmax.f32 %v252, %v253
      %vm255 = vcmp.gt.f32.partialorder %v247, %v236
      %vm256 = vcmp.gt.f32.partialorder %v254, %v237
      %v257 = vsel %vm255, 1, 0
      %v258 = vsel %vm256, 1, 0
      %v259 = vcvt.s32.f32 %v257
      %v260 = vcvt.s32.f32 %v258
      %v261 = vsub.f32 1.0, %v238
      %v262 = vsub.f32 1.0, %v239
      %v263 = vmul.f32 %v261, %v261
      %v264 = vmul.f32 %v262, %v262
      %v265 = vmul.f32 %v263, -0.75
      %v266 = vmul.f32 %v264, -0.75
      %v267 = vadd.f32 %v238, 1e-08
      %v268 = vadd.f32 %v239, 1e-08
      %v269 = vlog2.pop %v267
      %v270 = vmul.f32 %v269, 0.6931472
      %v271 = vlog2.pop %v268
      %v272 = vmul.f32 %v271, 0.6931472
      %v273 = vmul.f32 %v265, %v270
      %v274 = vmul.f32 %v266, %v272
      %v275 = vmul.f32 %v238, %v238
      %v276 = vmul.f32 %v239, %v239
      %v277 = vmul.f32 %v275, -0.25
      %v278 = vmul.f32 %v276, -0.25
      %v279 = vadd.f32 %v261, 1e-08
      %v280 = vadd.f32 %v262, 1e-08
      %v281 = vlog2.pop %v279
      %v282 = vmul.f32 %v281, 0.6931472
      %v283 = vlog2.pop %v280
      %v284 = vmul.f32 %v283, 0.6931472
      %v285 = vmul.f32 %v277, %v282
      %v286 = vmul.f32 %v278, %v284
      %v287 = vmul.f32 %v273, %v236
      %v288 = vmul.f32 %v274, %v237
      %v289 = vsub.f32 1.0, %v236
      %v290 = vsub.f32 1.0, %v237
      %v291 = vmul.f32 %v285, %v289
      %v292 = vmul.f32 %v286, %v290
      %v293 = vadd.f32 %v287, %v291
      %v294 = vadd.f32 %v288, %v292
      %v295 = vld [vmem:[#allocation2] sm:$0x1f]
      %v296 = vld [vmem:[#allocation2 + $0x8] sm:$0x1f]
      %v297 = vperm.slane %v259, 0
      %v298 = vperm.slane %v260, 0
      %v299 = vmul.f32 %v293, %v297
      %v300 = vmul.f32 %v294, %v298
      %v301 = vadd.f32 %v295, %v299
      %v302 = vadd.f32 %v296, %v300
      %303 = vst [vmem:[#allocation2] sm:$0x1f] %v301
      %304 = vst [vmem:[#allocation2 + $0x8] sm:$0x1f] %v302
      %v305 = vld [vmem:[#allocation3] sm:$0x1f]
      %v306 = vld [vmem:[#allocation3 + $0x8] sm:$0x1f]
      %v307 = vmul.f32 %v238, %v236
      %v308 = vmul.f32 %v239, %v237
      %v309 = vmul.f32 %v307, %v297
      %v310 = vmul.f32 %v308, %v298
      %v311 = vadd.f32 %v305, %v309
      %v312 = vadd.f32 %v306, %v310
      %313 = vst [vmem:[#allocation3] sm:$0x1f] %v311
      %314 = vst [vmem:[#allocation3 + $0x8] sm:$0x1f] %v312
      %v315 = vld [vmem:[#allocation4] sm:$0x1f]
      %v316 = vld [vmem:[#allocation4 + $0x8] sm:$0x1f]
      %v317 = vmul.f32 %v275, %v297
      %v318 = vmul.f32 %v276, %v298
      %v319 = vadd.f32 %v315, %v317
      %v320 = vadd.f32 %v316, %v318
      %321 = vst [vmem:[#allocation4] sm:$0x1f] %v319
      %322 = vst [vmem:[#allocation4 + $0x8] sm:$0x1f] %v320
      %v323 = vld [vmem:[#allocation5] sm:$0x1f]
      %v324 = vld [vmem:[#allocation5 + $0x8] sm:$0x1f]
      %v325 = vmul.f32 %v236, %v236
      %v326 = vmul.f32 %v237, %v237
      %v327 = vmul.f32 %v325, %v297
      %v328 = vmul.f32 %v326, %v298
      %v329 = vadd.f32 %v323, %v327
      %v330 = vadd.f32 %v324, %v328
      %331 = vst [vmem:[#allocation5] sm:$0x1f] %v329
      %332 = vst [vmem:[#allocation5 + $0x8] sm:$0x1f] %v330
      // Predicated region
      $region33: #{total_loss_forward.2} parent=27 // pred_check
        %p333 = pneg %p206
      $region34: #{total_loss_forward.2} parent=27 // pred_check_branch
        %335 = sbr.rel (%p333) target = $region36
      $region35: #{total_loss_forward.2} parent=27 // pred_region
        %v336 = vlaneseq
        %v337 = vshrl.u32 %v336, 7
        %vm338 = vcmp.eq.s32.totalorder %v337, 0
        %v339 = vld [vmem:[#allocation2] sm:$0x1f]
        %v340 = vld [vmem:[#allocation2 + $0x8] sm:$0x1f]
        %vm341 = vcmask 1044480
        %v342 = vsel %vm341, %v339, 0.0
        %v343 = vsel %vm341, %v340, 0.0
        %v344 = vadd.f32 %v342, %v343
        %345 = vadd.xlane.f32.xlu0 %v344
        %v346 = vpop.xlane.xlu0 %345
        %v347 = vrot.slane %v346, 4
        %v348 = vadd.f32 %v346, %v347
        %v349 = vrot.slane %v348, 2
        %v350 = vadd.f32 %v348, %v349
        %v351 = vrot.slane %v350, 1
        %v352 = vadd.f32 %v350, %v351
        %s353 = vtos %v352
        %v354 = vstv %s353
        %v355 = vsel %vm338, %v354, 0.0
        %vm356 = vcmp.eq.s32.totalorder %v337, 1
        %v357 = vld [vmem:[#allocation3] sm:$0x1f]
        %v358 = vld [vmem:[#allocation3 + $0x8] sm:$0x1f]
        %v359 = vsel %vm341, %v357, 0.0
        %v360 = vsel %vm341, %v358, 0.0
        %v361 = vadd.f32 %v359, %v360
        %362 = vadd.xlane.f32.xlu0 %v361
        %v363 = vpop.xlane.xlu0 %362
        %v364 = vrot.slane %v363, 4
        %v365 = vadd.f32 %v363, %v364
        %v366 = vrot.slane %v365, 2
        %v367 = vadd.f32 %v365, %v366
        %v368 = vrot.slane %v367, 1
        %v369 = vadd.f32 %v367, %v368
        %s370 = vtos %v369
        %v371 = vstv %s370
        %v372 = vsel %vm356, %v371, %v355
        %vm373 = vcmp.eq.s32.totalorder %v337, 2
        %v374 = vld [vmem:[#allocation4] sm:$0x1f]
        %v375 = vld [vmem:[#allocation4 + $0x8] sm:$0x1f]
        %v376 = vsel %vm341, %v374, 0.0
        %v377 = vsel %vm341, %v375, 0.0
        %v378 = vadd.f32 %v376, %v377
        %379 = vadd.xlane.f32.xlu0 %v378
        %v380 = vpop.xlane.xlu0 %379
        %v381 = vrot.slane %v380, 4
        %v382 = vadd.f32 %v380, %v381
        %v383 = vrot.slane %v382, 2
        %v384 = vadd.f32 %v382, %v383
        %v385 = vrot.slane %v384, 1
        %v386 = vadd.f32 %v384, %v385
        %s387 = vtos %v386
        %v388 = vstv %s387
        %v389 = vsel %vm373, %v388, %v372
        %vm390 = vcmp.eq.s32.totalorder %v337, 3
        %v391 = vld [vmem:[#allocation5] sm:$0x1f]
        %v392 = vld [vmem:[#allocation5 + $0x8] sm:$0x1f]
        %v393 = vsel %vm341, %v391, 0.0
        %v394 = vsel %vm341, %v392, 0.0
        %v395 = vadd.f32 %v393, %v394
        %396 = vadd.xlane.f32.xlu0 %v395
        %v397 = vpop.xlane.xlu0 %396
        %v398 = vrot.slane %v397, 4
        %v399 = vadd.f32 %v397, %v398
        %v400 = vrot.slane %v399, 2
        %v401 = vadd.f32 %v399, %v400
        %v402 = vrot.slane %v401, 1
        %v403 = vadd.f32 %v401, %v402
        %s404 = vtos %v403
        %v405 = vstv %s404
        %v406 = vsel %vm390, %v405, %v389
        %407 = vst [vmem:[%s205] sm:$0xff] %v406
      $region36: #{total_loss_forward.2} parent=27 // pred_fallthru
        _
      %p408 = scmp.lt.s32.totalorder %s17, 1
      %s409 = scalar_select %p408, %s17, 1
      %s410 = smul.addr %s409, 8
      %s411 = scalar_lea.vmem %s2, %s410
      // Predicated region
      $region37: #{total_loss_forward.2} parent=27 // pred_check
        %p412 = pneg %p99
      $region38: #{total_loss_forward.2} parent=27 // pred_check_branch
        %414 = sbr.rel (%p412) target = $region40
      $region39: #{total_loss_forward.2} parent=27 // pred_region
        _
      $region40: #{total_loss_forward.2} parent=27 // pred_fallthru
        _
    $region28: #{total_loss_forward.2} parent=5 // pred_fallthru
      _
    %p415 = scmp.le.s32.totalorder 2, %s8
    // Predicated region
    $region41: #{total_loss_forward.2} parent=5 // pred_check
      %p416 = pneg %p415
    $region42: #{total_loss_forward.2} parent=5 // pred_check_branch
      %418 = sbr.rel (%p416) target = $region44
    $region43: #{total_loss_forward.2} parent=5 // pred_region
      %s419 = ssub.s32 %s8, 2
      // Predicated region
      $region45: #{total_loss_forward.2} parent=43 // pred_check
        %p420 = pneg %p105
      $region46: #{total_loss_forward.2} parent=43 // pred_check_branch
        %422 = sbr.rel (%p420) target = $region48
      $region47: #{total_loss_forward.2} parent=43 // pred_region
        %p423 = scmp.lt.s32.totalorder %s19, 1
        %s424 = scalar_select %p423, %s19, 1
        %s425 = smul.addr %s424, 8
        %s426 = scalar_lea.vmem %s2, %s425
      $region48: #{total_loss_forward.2} parent=43 // pred_fallthru
        _
    $region44: #{total_loss_forward.2} parent=5 // pred_fallthru
      _
  $region6: #{total_loss_forward.2} parent=0 // loop_footer
    %s12 = sadd.s32 1, %s8
  $region7: #{total_loss_forward.2} parent=0 // loop_footer_branch
    %7 = sbr.rel target = $region3
  $region8: #{total_loss_forward.2} parent=0 // loop_exit
    _

// kernel: total_loss_forward.3
$region0: #{total_loss_forward.3}
  #allocation0 [shape = 'u32[]', space=smem, size = 0x4, offset = 0x4, fixed_abs, tag = 'smem constant byte address 0x4 - core index']
  #allocation1 [shape = 'u32[72,128]{1,0:T(1,128)}', space=vmem, size = 0x9000, scoped, tag = 'internal scratch']
  #allocation2 [shape = 'f32[5,256]{1,0:T(8,128)}', space=vmem, size = 0x2000, scoped, tag = 'scratch operand']
  #allocation3 [shape = 'f32[5,256]{1,0:T(8,128)}', space=vmem, size = 0x2000, scoped, tag = 'scratch operand']
  #allocation4 [shape = 'f32[5,256]{1,0:T(8,128)}', space=vmem, size = 0x2000, scoped, tag = 'scratch operand']
  #allocation5 [shape = 'f32[5,256]{1,0:T(8,128)}', space=vmem, size = 0x2000, scoped, tag = 'scratch operand']
  %s0 = inlined_call_operand.vmem [shape: f32[2,5,256], index: 0, kind: input, shape index: {}]
  %s1 = inlined_call_operand.vmem [shape: bf16[2,5,256], index: 1, kind: input, shape index: {}]
  %s2 = inlined_call_operand.vmem [shape: f32[2,8,128], index: 2, kind: output, shape index: {}]
  %s3 = sld [smem:[#allocation0]]
  $region49: #{total_loss_forward.3} parent=0
    _
  %s5 = ssub.s32 1, %s3
  %s6 = scalar_select 0, %s5, %s3
  loop: start=0, step=1, limit=4
  $region2: #{total_loss_forward.3} parent=0 // loop_pre_header
    _
  $region3: #{total_loss_forward.3} parent=0 // loop_header
    %s8 = sphi 0, %s12
    %p9 = scmp.ge.s32.totalorder %s8, 4
    %s15 = sphi 0, %s27
    %s16 = sphi 0, %s23
    %s17 = sphi 0, %s15
    %s18 = sphi 0, %s16
    %s19 = sphi 0, %s17
    %s20 = sphi 0, %s18
    %s32 = sphi 0, %s34
    %s35 = sphi 0, %s32
    %s36 = sphi 0, %s35
    %s52 = sphi 0, %s36
    %s60 = sphi 0, %s62
    %s63 = sphi 0, %s60
    %s64 = sphi 0, %s63
    %s80 = sphi 0, %s64
    %s86 = sphi 0, %s88
    %s89 = sphi 0, %s86
    %s90 = sphi 0, %s89
    %s106 = sphi 0, %s90
  $region4: #{total_loss_forward.3} parent=0 // loop_header_branch
    %11 = sbr.rel (%p9) target = $region8
  $region5: #{total_loss_forward.3} parent=0 // loop_body
    %s13 = ssub.s32 %s8, 1
    %s14 = ssub.s32 %s8, 2
    %s21 = sadd.s32 1, %s16
    %p22 = scmp.ge.s32.totalorder %s21, 1
    %s23 = scalar_select %p22, 0, %s21
    %s24 = sadd.s32 1, %s15
    %s25 = scalar_select %p22, %s24, %s15
    %p26 = scmp.ge.s32.totalorder %s25, 2
    %s27 = scalar_select %p26, 0, %s25
    %s28 = ssub.s32 %s15, %s27
    %s29 = ssub.s32 %s16, %s23
    %s30 = sor.u32 %s28, %s29
    %p31 = scmp.eq.s32.totalorder %s30, 0
    %s33 = sadd.s32 %s32, 1
    %s34 = scalar_select %p31, %s32, %s33
    %p37 = pneg %p31
    %p38 = scmp.eq.s32.totalorder %s8, 1
    %p39 = por %p37, %p38
    %p40 = scmp.ne.s32.totalorder %s32, %s35
    %p41 = scmp.eq.s32.totalorder %s8, 0
    %p42 = por %p40, %p41
    %p43 = scmp.ne.s32.totalorder %s32, %s35
    %p44 = scmp.eq.s32.totalorder %s13, 1
    %p45 = por %p43, %p44
    %p46 = scmp.ne.s32.totalorder %s35, %s36
    %p47 = scmp.eq.s32.totalorder %s13, 0
    %p48 = por %p46, %p47
    %p49 = scmp.ne.s32.totalorder %s35, %s36
    %p50 = scmp.eq.s32.totalorder %s14, 1
    %p51 = por %p49, %p50
    %p53 = scmp.ne.s32.totalorder %s36, %s52
    %p54 = scmp.eq.s32.totalorder %s14, 0
    %p55 = por %p53, %p54
    %s56 = ssub.s32 %s15, %s27
    %s57 = ssub.s32 %s16, %s23
    %s58 = sor.u32 %s56, %s57
    %p59 = scmp.eq.s32.totalorder %s58, 0
    %s61 = sadd.s32 %s60, 1
    %s62 = scalar_select %p59, %s60, %s61
    %p65 = pneg %p59
    %p66 = scmp.eq.s32.totalorder %s8, 1
    %p67 = por %p65, %p66
    %p68 = scmp.ne.s32.totalorder %s60, %s63
    %p69 = scmp.eq.s32.totalorder %s8, 0
    %p70 = por %p68, %p69
    %p71 = scmp.ne.s32.totalorder %s60, %s63
    %p72 = scmp.eq.s32.totalorder %s13, 1
    %p73 = por %p71, %p72
    %p74 = scmp.ne.s32.totalorder %s63, %s64
    %p75 = scmp.eq.s32.totalorder %s13, 0
    %p76 = por %p74, %p75
    %p77 = scmp.ne.s32.totalorder %s63, %s64
    %p78 = scmp.eq.s32.totalorder %s14, 1
    %p79 = por %p77, %p78
    %p81 = scmp.ne.s32.totalorder %s64, %s80
    %p82 = scmp.eq.s32.totalorder %s14, 0
    %p83 = por %p81, %p82
    %s84 = ssub.s32 %s15, %s27
    %p85 = scmp.eq.s32.totalorder %s84, 0
    %s87 = sadd.s32 %s86, 1
    %s88 = scalar_select %p85, %s86, %s87
    %p91 = pneg %p85
    %p92 = scmp.eq.s32.totalorder %s8, 1
    %p93 = por %p91, %p92
    %p94 = scmp.ne.s32.totalorder %s86, %s89
    %p95 = scmp.eq.s32.totalorder %s8, 0
    %p96 = por %p94, %p95
    %p97 = scmp.ne.s32.totalorder %s86, %s89
    %p98 = scmp.eq.s32.totalorder %s13, 1
    %p99 = por %p97, %p98
    %p100 = scmp.ne.s32.totalorder %s89, %s90
    %p101 = scmp.eq.s32.totalorder %s13, 0
    %p102 = por %p100, %p101
    %p103 = scmp.ne.s32.totalorder %s89, %s90
    %p104 = scmp.eq.s32.totalorder %s14, 1
    %p105 = por %p103, %p104
    %p107 = scmp.ne.s32.totalorder %s90, %s106
    %p108 = scmp.eq.s32.totalorder %s14, 0
    %p109 = por %p107, %p108
    %p110 = scmp.le.s32.totalorder 1, %s8
    %p111 = scmp.lt.s32.totalorder %s8, 3
    %p112 = pnand %p110, %p111
    %p113 = pneg %p112
    // Predicated region
    $region9: #{total_loss_forward.3} parent=5 // pred_check
      _
    $region10: #{total_loss_forward.3} parent=5 // pred_check_branch
      %115 = sbr.rel (%p112) target = $region12
    $region11: #{total_loss_forward.3} parent=5 // pred_region
      %s116 = ssub.s32 %s8, 1
    $region12: #{total_loss_forward.3} parent=5 // pred_fallthru
      _
    %p117 = scmp.lt.s32.totalorder %s8, 2
    // Predicated region
    $region13: #{total_loss_forward.3} parent=5 // pred_check
      %p118 = pneg %p117
    $region14: #{total_loss_forward.3} parent=5 // pred_check_branch
      %120 = sbr.rel (%p118) target = $region16
    $region15: #{total_loss_forward.3} parent=5 // pred_region
      // Predicated region
      $region17: #{total_loss_forward.3} parent=15 // pred_check
        %p121 = pneg %p42
      $region18: #{total_loss_forward.3} parent=15 // pred_check_branch
        %123 = sbr.rel (%p121) target = $region20
      $region19: #{total_loss_forward.3} parent=15 // pred_region
        %s124 = smul.u32 2, %s16
        %p125 = scmp.lt.s32.totalorder %s15, 1
        %s126 = scalar_select %p125, %s15, 1
        %p127 = scmp.lt.s32.totalorder %s124, 1
        %s128 = scalar_select %p127, %s124, 1
        %s129 = smul.addr %s126, 2
        %s130 = sadd.s32 %s128, %s129
        %s131 = smul.addr %s130, 8
        %s132 = scalar_lea.vmem %s0, %s131
        %s133 = smul.u32 2, %s16
      $region20: #{total_loss_forward.3} parent=15 // pred_fallthru
        _
      // Predicated region
      $region21: #{total_loss_forward.3} parent=15 // pred_check
        %p134 = pneg %p70
      $region22: #{total_loss_forward.3} parent=15 // pred_check_branch
        %136 = sbr.rel (%p134) target = $region24
      $region23: #{total_loss_forward.3} parent=15 // pred_region
        %s137 = smul.u32 2, %s16
        %p138 = scmp.lt.s32.totalorder %s15, 1
        %s139 = scalar_select %p138, %s15, 1
        %p140 = scmp.lt.s32.totalorder %s137, 1
        %s141 = scalar_select %p140, %s137, 1
        %s142 = smul.addr %s139, 2
        %s143 = sadd.s32 %s141, %s142
        %s144 = smul.addr %s143, 4
        %s145 = scalar_lea.vmem %s1, %s144
        %s146 = smul.u32 2, %s16
      $region24: #{total_loss_forward.3} parent=15 // pred_fallthru
        _
    $region16: #{total_loss_forward.3} parent=5 // pred_fallthru
      _
    %p147 = scmp.le.s32.totalorder 1, %s8
    %p148 = scmp.lt.s32.totalorder %s8, 3
    %p149 = pnand %p147, %p148
    %p150 = pneg %p149
    // Predicated region
    $region25: #{total_loss_forward.3} parent=5 // pred_check
      _
    $region26: #{total_loss_forward.3} parent=5 // pred_check_branch
      %152 = sbr.rel (%p149) target = $region28
    $region27: #{total_loss_forward.3} parent=5 // pred_region
      %s153 = ssub.s32 %s8, 1
      %s154 = smul.u32 2, %s18
      %p155 = scmp.lt.s32.totalorder %s17, 1
      %s156 = scalar_select %p155, %s17, 1
      %p157 = scmp.lt.s32.totalorder %s154, 1
      %s158 = scalar_select %p157, %s154, 1
      %s159 = smul.addr %s156, 2
      %s160 = sadd.s32 %s158, %s159
      %s161 = smul.addr %s160, 8
      %s162 = scalar_lea.vmem %s0, %s161
      %p163 = pneg %p48
      %p164 = pneg %p45
      %s165 = smul.u32 2, %s18
      %p166 = scmp.lt.s32.totalorder %s17, 1
      %s167 = scalar_select %p166, %s17, 1
      %p168 = scmp.lt.s32.totalorder %s165, 1
      %s169 = scalar_select %p168, %s165, 1
      %s170 = smul.addr %s167, 2
      %s171 = sadd.s32 %s169, %s170
      %s172 = smul.addr %s171, 4
      %s173 = scalar_lea.vmem %s1, %s172
      %p174 = pneg %p76
      %p175 = pneg %p73
      %p176 = pneg %p102
      %p177 = pneg %p99
      %p178 = scmp.lt.s32.totalorder %s17, 1
      %s179 = scalar_select %p178, %s17, 1
      %s180 = smul.addr %s179, 8
      %s181 = scalar_lea.vmem %s2, %s180
      %s182 = smul.u32 2, %s18
      %p183 = scmp.lt.s32.totalorder %s17, 1
      %s184 = scalar_select %p183, %s17, 1
      %p185 = scmp.lt.s32.totalorder %s182, 1
      %s186 = scalar_select %p185, %s182, 1
      %s187 = smul.addr %s184, 2
      %s188 = sadd.s32 %s186, %s187
      %s189 = smul.addr %s188, 8
      %s190 = scalar_lea.vmem %s0, %s189
      %s191 = smul.u32 2, %s18
      %s192 = smul.u32 2, %s18
      %p193 = scmp.lt.s32.totalorder %s17, 1
      %s194 = scalar_select %p193, %s17, 1
      %p195 = scmp.lt.s32.totalorder %s192, 1
      %s196 = scalar_select %p195, %s192, 1
      %s197 = smul.addr %s194, 2
      %s198 = sadd.s32 %s196, %s197
      %s199 = smul.addr %s198, 4
      %s200 = scalar_lea.vmem %s1, %s199
      %s201 = smul.u32 2, %s18
      %p202 = scmp.lt.s32.totalorder %s17, 1
      %s203 = scalar_select %p202, %s17, 1
      %s204 = smul.addr %s203, 8
      %s205 = scalar_lea.vmem %s2, %s204
      %p206 = scmp.eq.s32.totalorder %s18, 0
      // Predicated region
      $region29: #{total_loss_forward.3} parent=27 // pred_check
        %p207 = pneg %p206
      $region30: #{total_loss_forward.3} parent=27 // pred_check_branch
        %209 = sbr.rel (%p207) target = $region32
      $region31: #{total_loss_forward.3} parent=27 // pred_region
        %210 = vst [vmem:[#allocation2] sm:$0x1f] 0.0
        %211 = vst [vmem:[#allocation2 + $0x8] sm:$0x1f] 0.0
        %212 = vst [vmem:[#allocation3] sm:$0x1f] 0.0
        %213 = vst [vmem:[#allocation3 + $0x8] sm:$0x1f] 0.0
        %214 = vst [vmem:[#allocation4] sm:$0x1f] 0.0
        %215 = vst [vmem:[#allocation4 + $0x8] sm:$0x1f] 0.0
        %216 = vst [vmem:[#allocation5] sm:$0x1f] 0.0
        %217 = vst [vmem:[#allocation5 + $0x8] sm:$0x1f] 0.0
      $region32: #{total_loss_forward.3} parent=27 // pred_fallthru
        _
      %v218 = vld [vmem:[%s190] sm:$0x1f]
      %v219 = vld [vmem:[%s190 + $0x8] sm:$0x1f]
      %v220 = vld [vmem:[%s200] sm:$0x77]
      %v221 = vunpack.c.l.bf16 %v220
      %v222 = vunpack.c.h.bf16 %v220
      %v223 = vlaneseq
      %v224 = vand.u32 %v223, 127
      %v225 = vadd.s32 %v224, 128
      %s226 = smul.u32 %s18, 256
      %v227 = vstv %s226
      %v228 = vadd.s32 %v224, %v227
      %v229 = vadd.s32 %v225, %v227
      %vm230 = vcmp.lt.s32.totalorder %v228, 256
      %vm231 = vcmp.lt.s32.totalorder %v229, 256
      %v232 = vsel %vm230, 1, 0
      %v233 = vsel %vm231, 1, 0
      %vm234 = vcmp.eq.s32.totalorder %v232, 1
      %vm235 = vcmp.eq.s32.totalorder %v233, 1
      %v236 = vsel %vm234, %v221, 0.0
      %v237 = vsel %vm235, %v222, 0.0
      %v238 = vsel %vm234, %v218, 0.0
      %v239 = vsel %vm235, %v219, 0.0
      %vm240 = vcmask 1044480
      %v241 = vsel %vm240, %v238, -inf
      %v242 = vrot.slane %v241, 4
      %v243 = vmax.f32 %v241, %v242
      %v244 = vrot.slane %v243, 2
      %v245 = vmax.f32 %v243, %v244
      %v246 = vrot.slane %v245, 1
      %v247 = vmax.f32 %v245, %v246
      %v248 = vsel %vm240, %v239, -inf
      %v249 = vrot.slane %v248, 4
      %v250 = vmax.f32 %v248, %v249
      %v251 = vrot.slane %v250, 2
      %v252 = vmax.f32 %v250, %v251
      %v253 = vrot.slane %v252, 1
      %v254 = vmax.f32 %v252, %v253
      %v255 = vsub.f32 %v238, %v247
      %v256 = vsub.f32 %v239, %v254
      %v257 = vmul.f32 %v255, 1.442695
      %v258 = vpow.pop %v257
      %v259 = vmul.f32 %v256, 1.442695
      %v260 = vpow.pop %v259
      %v261 = vsel %vm240, %v258, 0.0
      %v262 = vrot.slane %v261, 4
      %v263 = vadd.f32 %v261, %v262
      %v264 = vrot.slane %v263, 2
      %v265 = vadd.f32 %v263, %v264
      %v266 = vrot.slane %v265, 1
      %v267 = vadd.f32 %v265, %v266
      %v268 = vsel %vm240, %v260, 0.0
      %v269 = vrot.slane %v268, 4
      %v270 = vadd.f32 %v268, %v269
      %v271 = vrot.slane %v270, 2
      %v272 = vadd.f32 %v270, %v271
      %v273 = vrot.slane %v272, 1
      %v274 = vadd.f32 %v272, %v273
      %v275 = vrcp.pop %v267
      %v276 = vmul.f32 %v267, %v275
      %v277 = vsub.f32 1.0, %v276
      %v278 = vmul.f32 %v275, %v277
      %v279 = vadd.f32 %v275, %v278
      %vm280 = vweird.f32 %v267
      %vm281 = vweird.f32 %v275
      %vm282 = vmor %vm280, %vm281
      %v283 = vsel %vm282, %v275, %v279
      %v284 = vand.u32 2147483647, %v267
      %vm285 = vcmp.eq.f32.partialorder %v284, 8.507059e+37
      %v286 = vand.u32 %v267, 2147483648
      %v287 = vor.u32 1.1754944e-38, %v286
      %v288 = vsel %vm285, %v287, %v283
      %v289 = vmul.f32 %v258, %v288
      %v290 = vrcp.pop %v274
      %v291 = vmul.f32 %v274, %v290
      %v292 = vsub.f32 1.0, %v291
      %v293 = vmul.f32 %v290, %v292
      %v294 = vadd.f32 %v290, %v293
      %vm295 = vweird.f32 %v274
      %vm296 = vweird.f32 %v290
      %vm297 = vmor %vm295, %vm296
      %v298 = vsel %vm297, %v290, %v294
      %v299 = vand.u32 2147483647, %v274
      %vm300 = vcmp.eq.f32.partialorder %v299, 8.507059e+37
      %v301 = vand.u32 %v274, 2147483648
      %v302 = vor.u32 1.1754944e-38, %v301
      %v303 = vsel %vm300, %v302, %v298
      %v304 = vmul.f32 %v260, %v303
      %vm305 = vcmask 1044481
      %v306 = vsel %vm305, %v236, -inf
      %v307 = vrot.slane %v306, 4
      %v308 = vmax.f32 %v306, %v307
      %v309 = vrot.slane %v308, 2
      %v310 = vmax.f32 %v308, %v309
      %v311 = vrot.slane %v310, 1
      %v312 = vmax.f32 %v310, %v311
      %v313 = vsel %vm305, %v237, -inf
      %v314 = vrot.slane %v313, 4
      %v315 = vmax.f32 %v313, %v314
      %v316 = vrot.slane %v315, 2
      %v317 = vmax.f32 %v315, %v316
      %v318 = vrot.slane %v317, 1
      %v319 = vmax.f32 %v317, %v318
      %vm320 = vcmp.gt.f32.partialorder %v312, %v236
      %vm321 = vcmp.gt.f32.partialorder %v319, %v237
      %v322 = vsel %vm320, 1, 0
      %v323 = vsel %vm321, 1, 0
      %v324 = vcvt.s32.f32 %v322
      %v325 = vcvt.s32.f32 %v323
      %v326 = vsub.f32 1.0, %v289
      %v327 = vsub.f32 1.0, %v304
      %v328 = vmul.f32 %v326, %v326
      %v329 = vmul.f32 %v327, %v327
      %v330 = vmul.f32 %v328, -0.75
      %v331 = vmul.f32 %v329, -0.75
      %v332 = vadd.f32 %v289, 1e-08
      %v333 = vadd.f32 %v304, 1e-08
      %v334 = vlog2.pop %v332
      %v335 = vmul.f32 %v334, 0.6931472
      %v336 = vlog2.pop %v333
      %v337 = vmul.f32 %v336, 0.6931472
      %v338 = vmul.f32 %v330, %v335
      %v339 = vmul.f32 %v331, %v337
      %v340 = vmul.f32 %v289, %v289
      %v341 = vmul.f32 %v304, %v304
      %v342 = vmul.f32 %v340, -0.25
      %v343 = vmul.f32 %v341, -0.25
      %v344 = vadd.f32 %v326, 1e-08
      %v345 = vadd.f32 %v327, 1e-08
      %v346 = vlog2.pop %v344
      %v347 = vmul.f32 %v346, 0.6931472
      %v348 = vlog2.pop %v345
      %v349 = vmul.f32 %v348, 0.6931472
      %v350 = vmul.f32 %v342, %v347
      %v351 = vmul.f32 %v343, %v349
      %v352 = vmul.f32 %v338, %v236
      %v353 = vmul.f32 %v339, %v237
      %v354 = vsub.f32 1.0, %v236
      %v355 = vsub.f32 1.0, %v237
      %v356 = vmul.f32 %v350, %v354
      %v357 = vmul.f32 %v351, %v355
      %v358 = vadd.f32 %v352, %v356
      %v359 = vadd.f32 %v353, %v357
      %v360 = vld [vmem:[#allocation2] sm:$0x1f]
      %v361 = vld [vmem:[#allocation2 + $0x8] sm:$0x1f]
      %v362 = vperm.slane %v324, 0
      %v363 = vperm.slane %v325, 0
      %v364 = vmul.f32 %v358, %v362
      %v365 = vmul.f32 %v359, %v363
      %v366 = vadd.f32 %v360, %v364
      %v367 = vadd.f32 %v361, %v365
      %368 = vst [vmem:[#allocation2] sm:$0x1f] %v366
      %369 = vst [vmem:[#allocation2 + $0x8] sm:$0x1f] %v367
      %v370 = vld [vmem:[#allocation3] sm:$0x1f]
      %v371 = vld [vmem:[#allocation3 + $0x8] sm:$0x1f]
      %v372 = vmul.f32 %v289, %v236
      %v373 = vmul.f32 %v304, %v237
      %v374 = vmul.f32 %v372, %v362
      %v375 = vmul.f32 %v373, %v363
      %v376 = vadd.f32 %v370, %v374
      %v377 = vadd.f32 %v371, %v375
      %378 = vst [vmem:[#allocation3] sm:$0x1f] %v376
      %379 = vst [vmem:[#allocation3 + $0x8] sm:$0x1f] %v377
      %v380 = vld [vmem:[#allocation4] sm:$0x1f]
      %v381 = vld [vmem:[#allocation4 + $0x8] sm:$0x1f]
      %v382 = vmul.f32 %v340, %v362
      %v383 = vmul.f32 %v341, %v363
      %v384 = vadd.f32 %v380, %v382
      %v385 = vadd.f32 %v381, %v383
      %386 = vst [vmem:[#allocation4] sm:$0x1f] %v384
      %387 = vst [vmem:[#allocation4 + $0x8] sm:$0x1f] %v385
      %v388 = vld [vmem:[#allocation5] sm:$0x1f]
      %v389 = vld [vmem:[#allocation5 + $0x8] sm:$0x1f]
      %v390 = vmul.f32 %v236, %v236
      %v391 = vmul.f32 %v237, %v237
      %v392 = vmul.f32 %v390, %v362
      %v393 = vmul.f32 %v391, %v363
      %v394 = vadd.f32 %v388, %v392
      %v395 = vadd.f32 %v389, %v393
      %396 = vst [vmem:[#allocation5] sm:$0x1f] %v394
      %397 = vst [vmem:[#allocation5 + $0x8] sm:$0x1f] %v395
      // Predicated region
      $region33: #{total_loss_forward.3} parent=27 // pred_check
        %p398 = pneg %p206
      $region34: #{total_loss_forward.3} parent=27 // pred_check_branch
        %400 = sbr.rel (%p398) target = $region36
      $region35: #{total_loss_forward.3} parent=27 // pred_region
        %v401 = vlaneseq
        %v402 = vshrl.u32 %v401, 7
        %vm403 = vcmp.eq.s32.totalorder %v402, 0
        %v404 = vld [vmem:[#allocation2] sm:$0x1f]
        %v405 = vld [vmem:[#allocation2 + $0x8] sm:$0x1f]
        %v406 = vsel %vm240, %v404, 0.0
        %v407 = vsel %vm240, %v405, 0.0
        %v408 = vadd.f32 %v406, %v407
        %409 = vadd.xlane.f32.xlu0 %v408
        %v410 = vpop.xlane.xlu0 %409
        %v411 = vrot.slane %v410, 4
        %v412 = vadd.f32 %v410, %v411
        %v413 = vrot.slane %v412, 2
        %v414 = vadd.f32 %v412, %v413
        %v415 = vrot.slane %v414, 1
        %v416 = vadd.f32 %v414, %v415
        %s417 = vtos %v416
        %v418 = vstv %s417
        %v419 = vsel %vm403, %v418, 0.0
        %vm420 = vcmp.eq.s32.totalorder %v402, 1
        %v421 = vld [vmem:[#allocation3] sm:$0x1f]
        %v422 = vld [vmem:[#allocation3 + $0x8] sm:$0x1f]
        %v423 = vsel %vm240, %v421, 0.0
        %v424 = vsel %vm240, %v422, 0.0
        %v425 = vadd.f32 %v423, %v424
        %426 = vadd.xlane.f32.xlu0 %v425
        %v427 = vpop.xlane.xlu0 %426
        %v428 = vrot.slane %v427, 4
        %v429 = vadd.f32 %v427, %v428
        %v430 = vrot.slane %v429, 2
        %v431 = vadd.f32 %v429, %v430
        %v432 = vrot.slane %v431, 1
        %v433 = vadd.f32 %v431, %v432
        %s434 = vtos %v433
        %v435 = vstv %s434
        %v436 = vsel %vm420, %v435, %v419
        %vm437 = vcmp.eq.s32.totalorder %v402, 2
        %v438 = vld [vmem:[#allocation4] sm:$0x1f]
        %v439 = vld [vmem:[#allocation4 + $0x8] sm:$0x1f]
        %v440 = vsel %vm240, %v438, 0.0
        %v441 = vsel %vm240, %v439, 0.0
        %v442 = vadd.f32 %v440, %v441
        %443 = vadd.xlane.f32.xlu0 %v442
        %v444 = vpop.xlane.xlu0 %443
        %v445 = vrot.slane %v444, 4
        %v446 = vadd.f32 %v444, %v445
        %v447 = vrot.slane %v446, 2
        %v448 = vadd.f32 %v446, %v447
        %v449 = vrot.slane %v448, 1
        %v450 = vadd.f32 %v448, %v449
        %s451 = vtos %v450
        %v452 = vstv %s451
        %v453 = vsel %vm437, %v452, %v436
        %vm454 = vcmp.eq.s32.totalorder %v402, 3
        %v455 = vld [vmem:[#allocation5] sm:$0x1f]
        %v456 = vld [vmem:[#allocation5 + $0x8] sm:$0x1f]
        %v457 = vsel %vm240, %v455, 0.0
        %v458 = vsel %vm240, %v456, 0.0
        %v459 = vadd.f32 %v457, %v458
        %460 = vadd.xlane.f32.xlu0 %v459
        %v461 = vpop.xlane.xlu0 %460
        %v462 = vrot.slane %v461, 4
        %v463 = vadd.f32 %v461, %v462
        %v464 = vrot.slane %v463, 2
        %v465 = vadd.f32 %v463, %v464
        %v466 = vrot.slane %v465, 1
        %v467 = vadd.f32 %v465, %v466
        %s468 = vtos %v467
        %v469 = vstv %s468
        %v470 = vsel %vm454, %v469, %v453
        %471 = vst [vmem:[%s205] sm:$0xff] %v470
      $region36: #{total_loss_forward.3} parent=27 // pred_fallthru
        _
      %p472 = scmp.lt.s32.totalorder %s17, 1
      %s473 = scalar_select %p472, %s17, 1
      %s474 = smul.addr %s473, 8
      %s475 = scalar_lea.vmem %s2, %s474
      // Predicated region
      $region37: #{total_loss_forward.3} parent=27 // pred_check
        %p476 = pneg %p99
      $region38: #{total_loss_forward.3} parent=27 // pred_check_branch
        %478 = sbr.rel (%p476) target = $region40
      $region39: #{total_loss_forward.3} parent=27 // pred_region
        _
      $region40: #{total_loss_forward.3} parent=27 // pred_fallthru
        _
    $region28: #{total_loss_forward.3} parent=5 // pred_fallthru
      _
    %p479 = scmp.le.s32.totalorder 2, %s8
    // Predicated region
    $region41: #{total_loss_forward.3} parent=5 // pred_check
      %p480 = pneg %p479
    $region42: #{total_loss_forward.3} parent=5 // pred_check_branch
      %482 = sbr.rel (%p480) target = $region44
    $region43: #{total_loss_forward.3} parent=5 // pred_region
      %s483 = ssub.s32 %s8, 2
      // Predicated region
      $region45: #{total_loss_forward.3} parent=43 // pred_check
        %p484 = pneg %p105
      $region46: #{total_loss_forward.3} parent=43 // pred_check_branch
        %486 = sbr.rel (%p484) target = $region48
      $region47: #{total_loss_forward.3} parent=43 // pred_region
        %p487 = scmp.lt.s32.totalorder %s19, 1
        %s488 = scalar_select %p487, %s19, 1
        %s489 = smul.addr %s488, 8
        %s490 = scalar_lea.vmem %s2, %s489
      $region48: #{total_loss_forward.3} parent=43 // pred_fallthru
        _
    $region44: #{total_loss_forward.3} parent=5 // pred_fallthru
      _
  $region6: #{total_loss_forward.3} parent=0 // loop_footer
    %s12 = sadd.s32 1, %s8
  $region7: #{total_loss_forward.3} parent=0 // loop_footer_branch
    %7 = sbr.rel target = $region3
  $region8: #{total_loss_forward.3} parent=0 // loop_exit
    _

</llo_original>
